<compile_context>
chip_gen: v7x
topology: tpu7x:2x2x1
jax: 0.10.0
libtpu: 0.0.40
codegen_flags: <defaults>
</compile_context>

<pallas_src>
import math
import jax
import jax.numpy as jnp
from jax.experimental import pallas as pl
from jax.experimental.pallas import tpu as pltpu


# ------------------------------ Pallas kernels ------------------------------

def fused_proj_kernel(w_ref, smod_ref, x_ref, noise_ref, bias_ref, out_ref):
    # Fused key/query/value style-modulated + demodulated 1x1 conv.
    #   w_ref:     (3E, C)      fused equalized base weight (already * 1/sqrt(C))
    #   smod_ref:  (1, 3E, C)   per-sample style, rows 0..E-1 = key style, etc.
    #   x_ref:     (1, C, tn)   input tile
    #   noise_ref: (1, 3E, tn)  pre-scaled per-projection noise tile
    #   bias_ref:  (3E, 1)
    #   out_ref:   (1, 3E, tn)  rows = [f ; g ; h]
    w = w_ref[...] * smod_ref[0]
    sigma_inv = jax.lax.rsqrt(jnp.sum(w * w, axis=1, keepdims=True) + 1e-8)
    w = w * sigma_inv                                                 # demodulate
    y = jnp.dot(w, x_ref[0], preferred_element_type=jnp.float32)     # (3E, tn)
    y = y + noise_ref[0] + bias_ref[...]
    out_ref[0] = y.astype(out_ref.dtype)


def attn_out_kernel(f_ref, g_ref, h_ref, x_ref, w_ref, s_ref, noise_ref,
                    bias_ref, gamma_ref, out_ref):
    # Attention (softmax over torch dim=1 == rows here) + final StyleConv
    # (modulate/demodulate/conv/noise/bias) + residual, for one column tile of
    # the score matrix (columns are independent under a row-softmax).
    f = f_ref[0]                                                      # (E, N)
    g = g_ref[0]                                                      # (E, tj)
    h = h_ref[0]                                                      # (E, N)
    # s[i, j] = sum_e f[e, i] * g[e, j]   (== torch.bmm(f^T, g) column tile)
    s = jax.lax.dot_general(f, g, (((0,), (0,)), ((), ())),
                            preferred_element_type=jnp.float32)       # (N, tj)
    m = jnp.max(s, axis=0, keepdims=True)                             # (1, tj)
    e = jnp.exp(s - m)
    colsum = jnp.sum(e, axis=0, keepdims=True)                        # (1, tj)
    # v = h @ softmax(s) computed as (h @ e) * (1/colsum): no beta materialized.
    v = jnp.dot(h, e, preferred_element_type=jnp.float32)             # (E, tj)
    v = v * pl.reciprocal(colsum, approx=True)
    # Final modulated 1x1 conv (self_att StyleConv).
    w = w_ref[...] * s_ref[0]                                         # (C, E)
    sigma_inv = jax.lax.rsqrt(jnp.sum(w * w, axis=1, keepdims=True) + 1e-8)
    w = w * sigma_inv
    o = jnp.dot(w, v, preferred_element_type=jnp.float32)             # (C, tj)
    o = o + noise_ref[0] + bias_ref[...]
    out_ref[0] = (gamma_ref[0] * o + x_ref[0]).astype(out_ref.dtype)  # residual


# ------------------------------ Pallas wrappers ------------------------------

def _pick_tile(n, target):
    # Largest multiple-of-128 tile <= target that divides n; else the full dim.
    if n % 128 != 0 or n <= target:
        return n
    t = (target // 128) * 128
    while t > 128 and n % t != 0:
        t -= 128
    return t if n % t == 0 else n


def fused_projection(w_fused, smod, x_flat, noise_fused, bias_fused, tile_n=512):
    B, C, N = x_flat.shape
    E3 = w_fused.shape[0]
    tn = _pick_tile(N, tile_n)
    return pl.pallas_call(
        fused_proj_kernel,
        out_shape=jax.ShapeDtypeStruct((B, E3, N), jnp.float32),
        grid=(B, N // tn),
        in_specs=[
            pl.BlockSpec((E3, C), lambda b, j: (0, 0)),
            pl.BlockSpec((1, E3, C), lambda b, j: (b, 0, 0)),
            pl.BlockSpec((1, C, tn), lambda b, j: (b, 0, j)),
            pl.BlockSpec((1, E3, tn), lambda b, j: (b, 0, j)),
            pl.BlockSpec((E3, 1), lambda b, j: (0, 0)),
        ],
        out_specs=pl.BlockSpec((1, E3, tn), lambda b, j: (b, 0, j)),
        compiler_params=pltpu.CompilerParams(
            dimension_semantics=("parallel", "parallel")),
    )(w_fused, smod, x_flat, noise_fused, bias_fused)


def attention_and_output(fgh, x_flat, w_att, s_att, noise_att, bias_att, gamma,
                         tile_j=512):
    B, E3, N = fgh.shape
    E = E3 // 3
    C = x_flat.shape[1]
    tj = _pick_tile(N, tile_j)
    return pl.pallas_call(
        attn_out_kernel,
        out_shape=jax.ShapeDtypeStruct((B, C, N), jnp.float32),
        grid=(B, N // tj),
        in_specs=[
            pl.BlockSpec((1, E, N), lambda b, j: (b, 0, 0)),   # f rows (full N)
            pl.BlockSpec((1, E, tj), lambda b, j: (b, 1, j)),  # g rows, col tile
            pl.BlockSpec((1, E, N), lambda b, j: (b, 2, 0)),   # h rows (full N)
            pl.BlockSpec((1, C, tj), lambda b, j: (b, 0, j)),  # residual x tile
            pl.BlockSpec((C, E), lambda b, j: (0, 0)),         # self_att weight
            pl.BlockSpec((1, 1, E), lambda b, j: (b, 0, 0)),   # self_att style
            pl.BlockSpec((1, 1, tj), lambda b, j: (b, 0, j)),  # self_att noise
            pl.BlockSpec((C, 1), lambda b, j: (0, 0)),         # self_att bias
            pl.BlockSpec(memory_space=pltpu.MemorySpace.SMEM), # gamma scalar
        ],
        out_specs=pl.BlockSpec((1, C, tj), lambda b, j: (b, 0, j)),
        compiler_params=pltpu.CompilerParams(
            dimension_semantics=("parallel", "parallel")),
    )(fgh, fgh, fgh, x_flat, w_att, s_att, noise_att, bias_att, gamma)


# ------------------------- Parameter setup & JAX glue ------------------------

def _prelu(x, a):
    return jnp.where(x >= 0, x, a * x)


def init_equalized_linear(key, in_p, out_p, bias_scale):
    kw, kb = jax.random.split(key)
    return {
        "w": jax.random.normal(kw, (out_p, in_p), jnp.float32),
        "b": jax.random.normal(kb, (out_p,), jnp.float32) * bias_scale,
        "c": 1.0 / math.sqrt(in_p),
    }


def equalized_linear(p, x):
    return x @ (p["w"] * p["c"]).T + p["b"]


def init_style_conv(key, d_latent, in_planes, out_planes):
    ks = jax.random.split(key, 6)
    return {
        # MappingNetwork(d_latent, 2): (EqualizedLinear + PReLU) x 2
        "map1": init_equalized_linear(ks[0], d_latent, d_latent, 0.0),
        "prelu1": jnp.full((d_latent,), 0.25, jnp.float32),
        "map2": init_equalized_linear(ks[1], d_latent, d_latent, 0.0),
        "prelu2": jnp.full((d_latent,), 0.25, jnp.float32),
        # to_style final EqualizedLinear(d_latent, in_planes, bias=1.0)
        "style": init_equalized_linear(ks[2], d_latent, in_planes, 1.0),
        # Conv2dWeightModulate weight (out, in, 1, 1) -> stored (out, in)
        "conv_w": jax.random.normal(ks[3], (out_planes, in_planes), jnp.float32),
        "conv_c": 1.0 / math.sqrt(in_planes),
        "scale_noise": jax.random.normal(ks[4], (1,), jnp.float32),
        "bias": jax.random.normal(ks[5], (out_planes,), jnp.float32),
    }


def to_style(p, w):
    # F.normalize(z, dim=1)
    z = w / jnp.maximum(jnp.linalg.norm(w, axis=1, keepdims=True), 1e-12)
    h = _prelu(equalized_linear(p["map1"], z), p["prelu1"])
    h = _prelu(equalized_linear(p["map2"], h), p["prelu2"])
    return equalized_linear(p["style"], h)                 # (B, in_planes)


def self_attention_forward(params, x, w, noise_maps, tile_n=512, tile_j=512):
    B, C, H, W = x.shape
    N = H * W
    x_flat = x.reshape(B, C, N)
    pk, pq, pv, pa = params["key"], params["query"], params["value"], params["self_att"]
    E = pk["conv_w"].shape[0]

    # Per-sample styles (tiny MLPs, plain JAX).
    s_k, s_q, s_v = to_style(pk, w), to_style(pq, w), to_style(pv, w)
    s_a = to_style(pa, w)                                                  # (B, E)

    # Fused key/query/value projection operands.
    w_fused = jnp.concatenate([pk["conv_w"] * pk["conv_c"],
                               pq["conv_w"] * pq["conv_c"],
                               pv["conv_w"] * pv["conv_c"]], axis=0)       # (3E, C)
    smod = jnp.repeat(jnp.stack([s_k, s_q, s_v], axis=1), E, axis=1)       # (B, 3E, C)
    noise_fused = jnp.repeat(
        jnp.concatenate([pk["scale_noise"][0] * noise_maps[0],
                         pq["scale_noise"][0] * noise_maps[1],
                         pv["scale_noise"][0] * noise_maps[2]], axis=1),
        E, axis=1)                                                         # (B, 3E, N)
    bias_fused = jnp.concatenate(
        [pk["bias"], pq["bias"], pv["bias"]]).reshape(3 * E, 1)

    fgh = fused_projection(w_fused, smod, x_flat, noise_fused, bias_fused,
                           tile_n)                                          # (B, 3E, N)

    w_att = pa["conv_w"] * pa["conv_c"]                                     # (C, E)
    noise_att = pa["scale_noise"][0] * noise_maps[3]                        # (B, 1, N)
    y = attention_and_output(fgh, x_flat, w_att, s_a.reshape(B, 1, E),
                             noise_att, pa["bias"].reshape(C, 1),
                             params["gamma"], tile_j)                       # (B, C, N)
    return y.reshape(B, C, H, W)


# ----------------------------- Pure-JAX reference ----------------------------

def reference_forward(params, x, w, noise_maps):
    B, C, H, W = x.shape
    N = H * W
    x_flat = x.reshape(B, C, N)
    hp = jax.lax.Precision.HIGHEST

    def style_conv_ref(p, xf, nmap):
        s = to_style(p, w)                                           # (B, Cin)
        wt = p["conv_w"] * p["conv_c"]                               # (Cout, Cin)
        wm = wt[None] * s[:, None, :]
        wm = wm * jax.lax.rsqrt(jnp.sum(wm * wm, axis=2, keepdims=True) + 1e-8)
        y = jnp.einsum("boi,bin->bon", wm, xf, precision=hp)
        return y + p["scale_noise"][0] * nmap + p["bias"][None, :, None]

    f = style_conv_ref(params["key"], x_flat, noise_maps[0])
    g = style_conv_ref(params["query"], x_flat, noise_maps[1])
    h = style_conv_ref(params["value"], x_flat, noise_maps[2])
    s = jnp.einsum("bei,bej->bij", f, g, precision=hp)
    beta = jax.nn.softmax(s, axis=1)                                 # torch dim=1
    v = jnp.einsum("bei,bij->bej", h, beta, precision=hp)
    o = style_conv_ref(params["self_att"], v, noise_maps[3])
    y = params["gamma"][0] * o + x_flat
    return y.reshape(B, C, H, W)


# ----------------------------------- main ------------------------------------

if __name__ == "__main__":
    d_latent, in_planes, embedding_channels = 8, 4, 8
    B, H, W = 2, 16, 16
    N = H * W

    root = jax.random.PRNGKey(0)
    k_params, k_x, k_w, k_noise = jax.random.split(root, 4)
    ks = jax.random.split(k_params, 5)

    params = {
        "key": init_style_conv(ks[0], d_latent, in_planes, embedding_channels),
        "query": init_style_conv(ks[1], d_latent, in_planes, embedding_channels),
        "value": init_style_conv(ks[2], d_latent, in_planes, embedding_channels),
        "self_att": init_style_conv(ks[3], d_latent, embedding_channels, in_planes),
        "gamma": jax.random.uniform(ks[4], (1,), jnp.float32, 0.04, 0.08),
    }

    x = jax.random.normal(k_x, (B, in_planes, H, W), jnp.float32)
    w = jax.random.normal(k_w, (B, d_latent), jnp.float32)
    # torch.randn(B, 1, H, W) per StyleConv call; drawn once here and shared
    # with the pure-JAX reference so both paths see identical noise.
    noise_maps = [jax.random.normal(k, (B, 1, N), jnp.float32)
                  for k in jax.random.split(k_noise, 4)]

    # tile 128 exercises the multi-tile (grid over N) path at this small N;
    # for large N use the 512+ defaults.
    fwd = jax.jit(lambda p, xx, ww, nm: self_attention_forward(
        p, xx, ww, nm, tile_n=128, tile_j=128))
    y = fwd(params, x, w, noise_maps)
    jax.block_until_ready(y)

    assert y.shape == (B, in_planes, H, W) and y.dtype == jnp.float32
    y_ref = reference_forward(params, x, w, noise_maps)
    err = float(jnp.max(jnp.abs(y - y_ref)))
    assert err < 3e-2, f"mismatch vs pure-JAX reference: {err}"
    print("KERNEL_OK")
</pallas_src>

<mosaic_0001>
module attributes {stable_mosaic.version = 11 : i64} {
  func.func @fused_proj_kernel(%arg0: i32, %arg1: i32, %arg2: memref<24x4xf32, #tpu.memory_space<vmem>>, %arg3: memref<1x24x4xf32, #tpu.memory_space<vmem>>, %arg4: memref<1x4x128xf32, #tpu.memory_space<vmem>>, %arg5: memref<1x24x128xf32, #tpu.memory_space<vmem>>, %arg6: memref<24x1xf32, #tpu.memory_space<vmem>>, %arg7: memref<1x24x128xf32, #tpu.memory_space<vmem>>) attributes {dimension_semantics = [#tpu.dimension_semantics<parallel>, #tpu.dimension_semantics<parallel>], iteration_bounds = array<i64: 2, 2>, scalar_prefetch = 0 : i64, scratch_operands = 0 : i64, tpu.core_type = #tpu.core_type<tc>, window_params = [{pipeline_mode = #tpu.pipeline_mode<synchronous>, transform_indices = @transform_0, window_bounds = array<i64: 24, 4>}, {transform_indices = @transform_1, window_bounds = array<i64: 1, 24, 4>}, {transform_indices = @transform_2, window_bounds = array<i64: 1, 4, 128>}, {transform_indices = @transform_3, window_bounds = array<i64: 1, 24, 128>}, {pipeline_mode = #tpu.pipeline_mode<synchronous>, transform_indices = @transform_4, window_bounds = array<i64: 24, 1>}, {transform_indices = @transform_5, window_bounds = array<i64: 1, 24, 128>}]} {
    %c0 = arith.constant 0 : index
    %c0_0 = arith.constant 0 : index
    %0 = vector.load %arg2[%c0, %c0_0] : memref<24x4xf32, #tpu.memory_space<vmem>>, vector<24x4xf32>
    %c0_1 = arith.constant 0 : index
    %c0_2 = arith.constant 0 : index
    %c0_3 = arith.constant 0 : index
    %1 = vector.load %arg3[%c0_1, %c0_2, %c0_3] : memref<1x24x4xf32, #tpu.memory_space<vmem>>, vector<1x24x4xf32>
    %2 = vector.shape_cast %1 : vector<1x24x4xf32> to vector<24x4xf32>
    %3 = arith.mulf %0, %2 : vector<24x4xf32>
    %4 = arith.mulf %3, %3 : vector<24x4xf32>
    %cst = arith.constant dense<0.000000e+00> : vector<24xf32>
    %5 = vector.multi_reduction <add>, %4, %cst [1] : vector<24x4xf32> to vector<24xf32>
    %6 = vector.shape_cast %5 : vector<24xf32> to vector<24x1xf32>
    %cst_4 = arith.constant 9.99999993E-9 : f32
    %7 = vector.broadcast %cst_4 : f32 to vector<24x1xf32>
    %8 = arith.addf %6, %7 : vector<24x1xf32>
    %9 = math.rsqrt %8 : vector<24x1xf32>
    %10 = vector.broadcast %9 : vector<24x1xf32> to vector<24x4xf32>
    %11 = arith.mulf %3, %10 : vector<24x4xf32>
    %c0_5 = arith.constant 0 : index
    %c0_6 = arith.constant 0 : index
    %c0_7 = arith.constant 0 : index
    %12 = vector.load %arg4[%c0_5, %c0_6, %c0_7] : memref<1x4x128xf32, #tpu.memory_space<vmem>>, vector<1x4x128xf32>
    %13 = vector.shape_cast %12 : vector<1x4x128xf32> to vector<4x128xf32>
    %cst_8 = arith.constant dense<0.000000e+00> : vector<24x128xf32>
    %14 = tpu.matmul %11, %13, %cst_8 {dimension_numbers = #tpu.dot_dimension_numbers<[1], [0], [0], [1], [0, 0, 1, 1], [], []>} : vector<24x4xf32>, vector<4x128xf32>, vector<24x128xf32> -> vector<24x128xf32>
    %c0_9 = arith.constant 0 : index
    %c0_10 = arith.constant 0 : index
    %c0_11 = arith.constant 0 : index
    %15 = vector.load %arg5[%c0_9, %c0_10, %c0_11] : memref<1x24x128xf32, #tpu.memory_space<vmem>>, vector<1x24x128xf32>
    %16 = vector.shape_cast %15 : vector<1x24x128xf32> to vector<24x128xf32>
    %17 = arith.addf %14, %16 : vector<24x128xf32>
    %c0_12 = arith.constant 0 : index
    %c0_13 = arith.constant 0 : index
    %18 = vector.load %arg6[%c0_12, %c0_13] : memref<24x1xf32, #tpu.memory_space<vmem>>, vector<24x1xf32>
    %19 = vector.broadcast %18 : vector<24x1xf32> to vector<24x128xf32>
    %20 = arith.addf %17, %19 : vector<24x128xf32>
    %c0_14 = arith.constant 0 : index
    %c0_15 = arith.constant 0 : index
    %c0_16 = arith.constant 0 : index
    %21 = vector.load %arg7[%c0_14, %c0_15, %c0_16] : memref<1x24x128xf32, #tpu.memory_space<vmem>>, vector<1x24x128xf32>
    %22 = vector.shape_cast %21 : vector<1x24x128xf32> to vector<24x128xf32>
    %23 = vector.shape_cast %20 : vector<24x128xf32> to vector<1x24x128xf32>
    tpu.vector_store %arg7[%c0_14, %c0_15, %c0_16], %23 {strides = array<i32>} : memref<1x24x128xf32, #tpu.memory_space<vmem>>, vector<1x24x128xf32>,
    return
  }
  func.func @transform_0(%arg0: i32, %arg1: i32) -> (i32, i32) {
    %c0_i32 = arith.constant 0 : i32
    %c0_i32_0 = arith.constant 0 : i32
    %c0_i32_1 = arith.constant 0 : i32
    return %c0_i32, %c0_i32_0 : i32, i32
  }
  func.func @transform_1(%arg0: i32, %arg1: i32) -> (i32, i32, i32) {
    %c0_i32 = arith.constant 0 : i32
    %c0_i32_0 = arith.constant 0 : i32
    %c0_i32_1 = arith.constant 0 : i32
    return %arg0, %c0_i32, %c0_i32_0 : i32, i32, i32
  }
  func.func @transform_2(%arg0: i32, %arg1: i32) -> (i32, i32, i32) {
    %c0_i32 = arith.constant 0 : i32
    %c0_i32_0 = arith.constant 0 : i32
    return %arg0, %c0_i32, %arg1 : i32, i32, i32
  }
  func.func @transform_3(%arg0: i32, %arg1: i32) -> (i32, i32, i32) {
    %c0_i32 = arith.constant 0 : i32
    %c0_i32_0 = arith.constant 0 : i32
    return %arg0, %c0_i32, %arg1 : i32, i32, i32
  }
  func.func @transform_4(%arg0: i32, %arg1: i32) -> (i32, i32) {
    %c0_i32 = arith.constant 0 : i32
    %c0_i32_0 = arith.constant 0 : i32
    %c0_i32_1 = arith.constant 0 : i32
    return %c0_i32, %c0_i32_0 : i32, i32
  }
  func.func @transform_5(%arg0: i32, %arg1: i32) -> (i32, i32, i32) {
    %c0_i32 = arith.constant 0 : i32
    %c0_i32_0 = arith.constant 0 : i32
    return %arg0, %c0_i32, %arg1 : i32, i32, i32
  }
}

module attributes {stable_mosaic.version = 11 : i64} {
  func.func @attn_out_kernel(%arg0: i32, %arg1: i32, %arg2: memref<1x8x256xf32, #tpu.memory_space<vmem>>, %arg3: memref<1x8x128xf32, #tpu.memory_space<vmem>>, %arg4: memref<1x8x256xf32, #tpu.memory_space<vmem>>, %arg5: memref<1x4x128xf32, #tpu.memory_space<vmem>>, %arg6: memref<4x8xf32, #tpu.memory_space<vmem>>, %arg7: memref<1x1x8xf32, #tpu.memory_space<vmem>>, %arg8: memref<1x1x128xf32, #tpu.memory_space<vmem>>, %arg9: memref<4x1xf32, #tpu.memory_space<vmem>>, %arg10: memref<1xf32, #tpu.memory_space<smem>>, %arg11: memref<1x4x128xf32, #tpu.memory_space<vmem>>) attributes {dimension_semantics = [#tpu.dimension_semantics<parallel>, #tpu.dimension_semantics<parallel>], iteration_bounds = array<i64: 2, 2>, scalar_prefetch = 0 : i64, scratch_operands = 0 : i64, tpu.core_type = #tpu.core_type<tc>, window_params = [{transform_indices = @transform_0, window_bounds = array<i64: 1, 8, 256>}, {transform_indices = @transform_1, window_bounds = array<i64: 1, 8, 128>}, {transform_indices = @transform_2, window_bounds = array<i64: 1, 8, 256>}, {transform_indices = @transform_3, window_bounds = array<i64: 1, 4, 128>}, {pipeline_mode = #tpu.pipeline_mode<synchronous>, transform_indices = @transform_4, window_bounds = array<i64: 4, 8>}, {transform_indices = @transform_5, window_bounds = array<i64: 1, 1, 8>}, {transform_indices = @transform_6, window_bounds = array<i64: 1, 1, 128>}, {pipeline_mode = #tpu.pipeline_mode<synchronous>, transform_indices = @transform_7, window_bounds = array<i64: 4, 1>}, {transform_indices = @transform_8, window_bounds = array<i64: 1>}, {transform_indices = @transform_9, window_bounds = array<i64: 1, 4, 128>}]} {
    %c0 = arith.constant 0 : index
    %c0_0 = arith.constant 0 : index
    %c0_1 = arith.constant 0 : index
    %0 = vector.load %arg2[%c0, %c0_0, %c0_1] : memref<1x8x256xf32, #tpu.memory_space<vmem>>, vector<1x8x256xf32>
    %1 = vector.shape_cast %0 : vector<1x8x256xf32> to vector<8x256xf32>
    %c0_2 = arith.constant 0 : index
    %c0_3 = arith.constant 0 : index
    %c0_4 = arith.constant 0 : index
    %2 = vector.load %arg3[%c0_2, %c0_3, %c0_4] : memref<1x8x128xf32, #tpu.memory_space<vmem>>, vector<1x8x128xf32>
    %3 = vector.shape_cast %2 : vector<1x8x128xf32> to vector<8x128xf32>
    %c0_5 = arith.constant 0 : index
    %c0_6 = arith.constant 0 : index
    %c0_7 = arith.constant 0 : index
    %4 = vector.load %arg4[%c0_5, %c0_6, %c0_7] : memref<1x8x256xf32, #tpu.memory_space<vmem>>, vector<1x8x256xf32>
    %5 = vector.shape_cast %4 : vector<1x8x256xf32> to vector<8x256xf32>
    %cst = arith.constant dense<0.000000e+00> : vector<256x128xf32>
    %6 = tpu.matmul %1, %3, %cst {dimension_numbers = #tpu.dot_dimension_numbers<[0], [0], [1], [1], [0, 1, 1, 1], [], []>} : vector<8x256xf32>, vector<8x128xf32>, vector<256x128xf32> -> vector<256x128xf32>
    %cst_8 = arith.constant dense<0xFF800000> : vector<128xf32>
    %7 = vector.multi_reduction <maximumf>, %6, %cst_8 [0] : vector<256x128xf32> to vector<128xf32>
    %8 = vector.shape_cast %7 : vector<128xf32> to vector<1x128xf32>
    %9 = vector.broadcast %8 : vector<1x128xf32> to vector<256x128xf32>
    %10 = arith.subf %6, %9 : vector<256x128xf32>
    %11 = math.exp %10 : vector<256x128xf32>
    %cst_9 = arith.constant dense<0.000000e+00> : vector<128xf32>
    %12 = vector.multi_reduction <add>, %11, %cst_9 [0] : vector<256x128xf32> to vector<128xf32>
    %13 = vector.shape_cast %12 : vector<128xf32> to vector<1x128xf32>
    %cst_10 = arith.constant dense<0.000000e+00> : vector<8x128xf32>
    %14 = tpu.matmul %5, %11, %cst_10 {dimension_numbers = #tpu.dot_dimension_numbers<[1], [0], [0], [1], [0, 0, 1, 1], [], []>} : vector<8x256xf32>, vector<256x128xf32>, vector<8x128xf32> -> vector<8x128xf32>
    %15 = tpu.reciprocal %13 {approx = true} : vector<1x128xf32> -> vector<1x128xf32>
    %16 = vector.broadcast %15 : vector<1x128xf32> to vector<8x128xf32>
    %17 = arith.mulf %14, %16 : vector<8x128xf32>
    %c0_11 = arith.constant 0 : index
    %c0_12 = arith.constant 0 : index
    %18 = vector.load %arg6[%c0_11, %c0_12] : memref<4x8xf32, #tpu.memory_space<vmem>>, vector<4x8xf32>
    %c0_13 = arith.constant 0 : index
    %c0_14 = arith.constant 0 : index
    %c0_15 = arith.constant 0 : index
    %19 = vector.load %arg7[%c0_13, %c0_14, %c0_15] : memref<1x1x8xf32, #tpu.memory_space<vmem>>, vector<1x1x8xf32>
    %20 = vector.shape_cast %19 : vector<1x1x8xf32> to vector<1x8xf32>
    %21 = vector.broadcast %20 : vector<1x8xf32> to vector<4x8xf32>
    %22 = arith.mulf %18, %21 : vector<4x8xf32>
    %23 = arith.mulf %22, %22 : vector<4x8xf32>
    %cst_16 = arith.constant dense<0.000000e+00> : vector<4xf32>
    %24 = vector.multi_reduction <add>, %23, %cst_16 [1] : vector<4x8xf32> to vector<4xf32>
    %25 = vector.shape_cast %24 : vector<4xf32> to vector<4x1xf32>
    %cst_17 = arith.constant 9.99999993E-9 : f32
    %26 = vector.broadcast %cst_17 : f32 to vector<4x1xf32>
    %27 = arith.addf %25, %26 : vector<4x1xf32>
    %28 = math.rsqrt %27 : vector<4x1xf32>
    %29 = vector.broadcast %28 : vector<4x1xf32> to vector<4x8xf32>
    %30 = arith.mulf %22, %29 : vector<4x8xf32>
    %cst_18 = arith.constant dense<0.000000e+00> : vector<4x128xf32>
    %31 = tpu.matmul %30, %17, %cst_18 {dimension_numbers = #tpu.dot_dimension_numbers<[1], [0], [0], [1], [0, 0, 1, 1], [], []>} : vector<4x8xf32>, vector<8x128xf32>, vector<4x128xf32> -> vector<4x128xf32>
    %c0_19 = arith.constant 0 : index
    %c0_20 = arith.constant 0 : index
    %c0_21 = arith.constant 0 : index
    %32 = vector.load %arg8[%c0_19, %c0_20, %c0_21] : memref<1x1x128xf32, #tpu.memory_space<vmem>>, vector<1x1x128xf32>
    %33 = vector.shape_cast %32 : vector<1x1x128xf32> to vector<1x128xf32>
    %34 = vector.broadcast %33 : vector<1x128xf32> to vector<4x128xf32>
    %35 = arith.addf %31, %34 : vector<4x128xf32>
    %c0_22 = arith.constant 0 : index
    %c0_23 = arith.constant 0 : index
    %36 = vector.load %arg9[%c0_22, %c0_23] : memref<4x1xf32, #tpu.memory_space<vmem>>, vector<4x1xf32>
    %37 = vector.broadcast %36 : vector<4x1xf32> to vector<4x128xf32>
    %38 = arith.addf %35, %37 : vector<4x128xf32>
    %c0_24 = arith.constant 0 : index
    %39 = memref.load %arg10[%c0_24] : memref<1xf32, #tpu.memory_space<smem>>
    %40 = vector.broadcast %39 : f32 to vector<4x128xf32>
    %41 = arith.mulf %40, %38 : vector<4x128xf32>
    %c0_25 = arith.constant 0 : index
    %c0_26 = arith.constant 0 : index
    %c0_27 = arith.constant 0 : index
    %42 = vector.load %arg5[%c0_25, %c0_26, %c0_27] : memref<1x4x128xf32, #tpu.memory_space<vmem>>, vector<1x4x128xf32>
    %43 = vector.shape_cast %42 : vector<1x4x128xf32> to vector<4x128xf32>
    %44 = arith.addf %41, %43 : vector<4x128xf32>
    %c0_28 = arith.constant 0 : index
    %c0_29 = arith.constant 0 : index
    %c0_30 = arith.constant 0 : index
    %45 = vector.load %arg11[%c0_28, %c0_29, %c0_30] : memref<1x4x128xf32, #tpu.memory_space<vmem>>, vector<1x4x128xf32>
    %46 = vector.shape_cast %45 : vector<1x4x128xf32> to vector<4x128xf32>
    %47 = vector.shape_cast %44 : vector<4x128xf32> to vector<1x4x128xf32>
    tpu.vector_store %arg11[%c0_28, %c0_29, %c0_30], %47 {strides = array<i32>} : memref<1x4x128xf32, #tpu.memory_space<vmem>>, vector<1x4x128xf32>,
    return
  }
  func.func @transform_0(%arg0: i32, %arg1: i32) -> (i32, i32, i32) {
    %c0_i32 = arith.constant 0 : i32
    %c0_i32_0 = arith.constant 0 : i32
    %c0_i32_1 = arith.constant 0 : i32
    return %arg0, %c0_i32, %c0_i32_0 : i32, i32, i32
  }
  func.func @transform_1(%arg0: i32, %arg1: i32) -> (i32, i32, i32) {
    %c1_i32 = arith.constant 1 : i32
    %c0_i32 = arith.constant 0 : i32
    return %arg0, %c1_i32, %arg1 : i32, i32, i32
  }
  func.func @transform_2(%arg0: i32, %arg1: i32) -> (i32, i32, i32) {
    %c2_i32 = arith.constant 2 : i32
    %c0_i32 = arith.constant 0 : i32
    %c0_i32_0 = arith.constant 0 : i32
    return %arg0, %c2_i32, %c0_i32 : i32, i32, i32
  }
  func.func @transform_3(%arg0: i32, %arg1: i32) -> (i32, i32, i32) {
    %c0_i32 = arith.constant 0 : i32
    %c0_i32_0 = arith.constant 0 : i32
    return %arg0, %c0_i32, %arg1 : i32, i32, i32
  }
  func.func @transform_4(%arg0: i32, %arg1: i32) -> (i32, i32) {
    %c0_i32 = arith.constant 0 : i32
    %c0_i32_0 = arith.constant 0 : i32
    %c0_i32_1 = arith.constant 0 : i32
    return %c0_i32, %c0_i32_0 : i32, i32
  }
  func.func @transform_5(%arg0: i32, %arg1: i32) -> (i32, i32, i32) {
    %c0_i32 = arith.constant 0 : i32
    %c0_i32_0 = arith.constant 0 : i32
    %c0_i32_1 = arith.constant 0 : i32
    return %arg0, %c0_i32, %c0_i32_0 : i32, i32, i32
  }
  func.func @transform_6(%arg0: i32, %arg1: i32) -> (i32, i32, i32) {
    %c0_i32 = arith.constant 0 : i32
    %c0_i32_0 = arith.constant 0 : i32
    return %arg0, %c0_i32, %arg1 : i32, i32, i32
  }
  func.func @transform_7(%arg0: i32, %arg1: i32) -> (i32, i32) {
    %c0_i32 = arith.constant 0 : i32
    %c0_i32_0 = arith.constant 0 : i32
    %c0_i32_1 = arith.constant 0 : i32
    return %c0_i32, %c0_i32_0 : i32, i32
  }
  func.func @transform_8(%arg0: i32, %arg1: i32) -> i32 {
    %c0_i32 = arith.constant 0 : i32
    %c0_i32_0 = arith.constant 0 : i32
    return %c0_i32 : i32
  }
  func.func @transform_9(%arg0: i32, %arg1: i32) -> (i32, i32, i32) {
    %c0_i32 = arith.constant 0 : i32
    %c0_i32_0 = arith.constant 0 : i32
    return %arg0, %c0_i32, %arg1 : i32, i32, i32
  }
}

</mosaic_0001>

<llo_original>
// kernel: _lambda_.2
$region0: #{_lambda_.2}
  #allocation0 [shape = 'u32[]', space=smem, size = 0x4, offset = 0x4, fixed_abs, tag = 'smem constant byte address 0x4 - core index']
  #allocation1 [shape = 'u32[144,128]{1,0:T(1,128)}', space=vmem, size = 0x12000, scoped, tag = 'internal scratch']
  %s0 = inlined_call_operand.vmem [shape: f32[24,4], index: 0, kind: input, shape index: {}]
  %s1 = inlined_call_operand.vmem [shape: f32[2,24,4], index: 1, kind: input, shape index: {}]
  %s2 = inlined_call_operand.vmem [shape: f32[2,4,256], index: 2, kind: input, shape index: {}]
  %s3 = inlined_call_operand.vmem [shape: f32[2,24,256], index: 3, kind: input, shape index: {}]
  %s4 = inlined_call_operand.vmem [shape: f32[24,1], index: 4, kind: input, shape index: {}]
  %s5 = inlined_call_operand.vmem [shape: f32[2,24,256], index: 5, kind: output, shape index: {}]
  %s6 = sld [smem:[#allocation0]]
  $region125: #{_lambda_.2} parent=0
    _
  %s8 = ssub.s32 1, %s6
  %s9 = scalar_select 0, %s8, %s6
  $region1: #{_lambda_.2} parent=0
    #allocation2 [shape = 'u8[24576]{0}', space=vmem, size = 0x6000, scoped, tag = 'input window, operand 3']
    #allocation3 [shape = 'u8[24576]{0}', space=vmem, size = 0x6000, scoped, tag = 'output window, operand 0']
    loop: start=0, step=1, limit=6
    $region2: #{_lambda_.2} parent=1 // loop_pre_header
      _
    $region3: #{_lambda_.2} parent=1 // loop_header
      %s11 = sphi 0, %s15
      %p12 = scmp.ge.s32.totalorder %s11, 6
      %s18 = sphi 0, %s30
      %s19 = sphi 0, %s26
      %s20 = sphi 0, %s18
      %s21 = sphi 0, %s19
      %s22 = sphi 0, %s20
      %s23 = sphi 0, %s21
      %s31 = sphi 0, %s31
      %s33 = sphi 0, %s31
      %s34 = sphi 0, %s33
      %s48 = sphi 0, %s34
      %s54 = sphi 0, %s56
      %s57 = sphi 0, %s54
      %s58 = sphi 0, %s57
      %s74 = sphi 0, %s58
      %s82 = sphi 0, %s84
      %s85 = sphi 0, %s82
      %s86 = sphi 0, %s85
      %s102 = sphi 0, %s86
      %s110 = sphi 0, %s112
      %s113 = sphi 0, %s110
      %s114 = sphi 0, %s113
      %s130 = sphi 0, %s114
      %s134 = sphi 0, %s134
      %s136 = sphi 0, %s134
      %s137 = sphi 0, %s136
      %s151 = sphi 0, %s137
      %s159 = sphi 0, %s161
      %s162 = sphi 0, %s159
      %s163 = sphi 0, %s162
      %s179 = sphi 0, %s163
    $region4: #{_lambda_.2} parent=1 // loop_header_branch
      %14 = sbr.rel (%p12) target = $region8
    $region5: #{_lambda_.2} parent=1 // loop_body
      %s16 = ssub.s32 %s11, 1
      %s17 = ssub.s32 %s11, 2
      %s24 = sadd.s32 1, %s19
      %p25 = scmp.ge.s32.totalorder %s24, 2
      %s26 = scalar_select %p25, 0, %s24
      %s27 = sadd.s32 1, %s18
      %s28 = scalar_select %p25, %s27, %s18
      %p29 = scmp.ge.s32.totalorder %s28, 2
      %s30 = scalar_select %p29, 0, %s28
      %s32 = sadd.s32 %s31, 1
      %p35 = scmp.eq.s32.totalorder %s11, 3
      %p36 = scmp.ne.s32.totalorder %s31, %s33
      %p37 = scmp.eq.s32.totalorder %s11, 0
      %p38 = por %p36, %p37
      %p39 = scmp.ne.s32.totalorder %s31, %s33
      %p40 = scmp.eq.s32.totalorder %s16, 3
      %p41 = por %p39, %p40
      %p42 = scmp.ne.s32.totalorder %s33, %s34
      %p43 = scmp.eq.s32.totalorder %s16, 0
      %p44 = por %p42, %p43
      %p45 = scmp.ne.s32.totalorder %s33, %s34
      %p46 = scmp.eq.s32.totalorder %s17, 3
      %p47 = por %p45, %p46
      %p49 = scmp.ne.s32.totalorder %s34, %s48
      %p50 = scmp.eq.s32.totalorder %s17, 0
      %p51 = por %p49, %p50
      %s52 = ssub.s32 %s18, %s30
      %p53 = scmp.eq.s32.totalorder %s52, 0
      %s55 = sadd.s32 %s54, 1
      %s56 = scalar_select %p53, %s54, %s55
      %p59 = pneg %p53
      %p60 = scmp.eq.s32.totalorder %s11, 3
      %p61 = por %p59, %p60
      %p62 = scmp.ne.s32.totalorder %s54, %s57
      %p63 = scmp.eq.s32.totalorder %s11, 0
      %p64 = por %p62, %p63
      %p65 = scmp.ne.s32.totalorder %s54, %s57
      %p66 = scmp.eq.s32.totalorder %s16, 3
      %p67 = por %p65, %p66
      %p68 = scmp.ne.s32.totalorder %s57, %s58
      %p69 = scmp.eq.s32.totalorder %s16, 0
      %p70 = por %p68, %p69
      %p71 = scmp.ne.s32.totalorder %s57, %s58
      %p72 = scmp.eq.s32.totalorder %s17, 3
      %p73 = por %p71, %p72
      %p75 = scmp.ne.s32.totalorder %s58, %s74
      %p76 = scmp.eq.s32.totalorder %s17, 0
      %p77 = por %p75, %p76
      %s78 = ssub.s32 %s18, %s30
      %s79 = ssub.s32 %s19, %s26
      %s80 = sor.u32 %s78, %s79
      %p81 = scmp.eq.s32.totalorder %s80, 0
      %s83 = sadd.s32 %s82, 1
      %s84 = scalar_select %p81, %s82, %s83
      %p87 = pneg %p81
      %p88 = scmp.eq.s32.totalorder %s11, 3
      %p89 = por %p87, %p88
      %p90 = scmp.ne.s32.totalorder %s82, %s85
      %p91 = scmp.eq.s32.totalorder %s11, 0
      %p92 = por %p90, %p91
      %p93 = scmp.ne.s32.totalorder %s82, %s85
      %p94 = scmp.eq.s32.totalorder %s16, 3
      %p95 = por %p93, %p94
      %p96 = scmp.ne.s32.totalorder %s85, %s86
      %p97 = scmp.eq.s32.totalorder %s16, 0
      %p98 = por %p96, %p97
      %p99 = scmp.ne.s32.totalorder %s85, %s86
      %p100 = scmp.eq.s32.totalorder %s17, 3
      %p101 = por %p99, %p100
      %p103 = scmp.ne.s32.totalorder %s86, %s102
      %p104 = scmp.eq.s32.totalorder %s17, 0
      %p105 = por %p103, %p104
      %s106 = ssub.s32 %s18, %s30
      %s107 = ssub.s32 %s19, %s26
      %s108 = sor.u32 %s106, %s107
      %p109 = scmp.eq.s32.totalorder %s108, 0
      %s111 = sadd.s32 %s110, 1
      %s112 = scalar_select %p109, %s110, %s111
      %p115 = pneg %p109
      %p116 = scmp.eq.s32.totalorder %s11, 3
      %p117 = por %p115, %p116
      %p118 = scmp.ne.s32.totalorder %s110, %s113
      %p119 = scmp.eq.s32.totalorder %s11, 0
      %p120 = por %p118, %p119
      %p121 = scmp.ne.s32.totalorder %s110, %s113
      %p122 = scmp.eq.s32.totalorder %s16, 3
      %p123 = por %p121, %p122
      %p124 = scmp.ne.s32.totalorder %s113, %s114
      %p125 = scmp.eq.s32.totalorder %s16, 0
      %p126 = por %p124, %p125
      %p127 = scmp.ne.s32.totalorder %s113, %s114
      %p128 = scmp.eq.s32.totalorder %s17, 3
      %p129 = por %p127, %p128
      %p131 = scmp.ne.s32.totalorder %s114, %s130
      %p132 = scmp.eq.s32.totalorder %s17, 0
      %p133 = por %p131, %p132
      %s135 = sadd.s32 %s134, 1
      %p138 = scmp.eq.s32.totalorder %s11, 3
      %p139 = scmp.ne.s32.totalorder %s134, %s136
      %p140 = scmp.eq.s32.totalorder %s11, 0
      %p141 = por %p139, %p140
      %p142 = scmp.ne.s32.totalorder %s134, %s136
      %p143 = scmp.eq.s32.totalorder %s16, 3
      %p144 = por %p142, %p143
      %p145 = scmp.ne.s32.totalorder %s136, %s137
      %p146 = scmp.eq.s32.totalorder %s16, 0
      %p147 = por %p145, %p146
      %p148 = scmp.ne.s32.totalorder %s136, %s137
      %p149 = scmp.eq.s32.totalorder %s17, 3
      %p150 = por %p148, %p149
      %p152 = scmp.ne.s32.totalorder %s137, %s151
      %p153 = scmp.eq.s32.totalorder %s17, 0
      %p154 = por %p152, %p153
      %s155 = ssub.s32 %s18, %s30
      %s156 = ssub.s32 %s19, %s26
      %s157 = sor.u32 %s155, %s156
      %p158 = scmp.eq.s32.totalorder %s157, 0
      %s160 = sadd.s32 %s159, 1
      %s161 = scalar_select %p158, %s159, %s160
      %p164 = pneg %p158
      %p165 = scmp.eq.s32.totalorder %s11, 3
      %p166 = por %p164, %p165
      %p167 = scmp.ne.s32.totalorder %s159, %s162
      %p168 = scmp.eq.s32.totalorder %s11, 0
      %p169 = por %p167, %p168
      %p170 = scmp.ne.s32.totalorder %s159, %s162
      %p171 = scmp.eq.s32.totalorder %s16, 3
      %p172 = por %p170, %p171
      %p173 = scmp.ne.s32.totalorder %s162, %s163
      %p174 = scmp.eq.s32.totalorder %s16, 0
      %p175 = por %p173, %p174
      %p176 = scmp.ne.s32.totalorder %s162, %s163
      %p177 = scmp.eq.s32.totalorder %s17, 3
      %p178 = por %p176, %p177
      %p180 = scmp.ne.s32.totalorder %s163, %s179
      %p181 = scmp.eq.s32.totalorder %s17, 0
      %p182 = por %p180, %p181
      %p183 = scmp.le.s32.totalorder 1, %s11
      %p184 = scmp.lt.s32.totalorder %s11, 5
      %p185 = pnand %p183, %p184
      %p186 = pneg %p185
      // Predicated region
      $region9: #{_lambda_.2} parent=5 // pred_check
        _
      $region10: #{_lambda_.2} parent=5 // pred_check_branch
        %188 = sbr.rel (%p185) target = $region12
      $region11: #{_lambda_.2} parent=5 // pred_region
        %s189 = ssub.s32 %s11, 1
        // Predicated region
        $region13: #{_lambda_.2} parent=11 // pred_check
          %p190 = pneg %p44
        $region14: #{_lambda_.2} parent=11 // pred_check_branch
          %192 = sbr.rel (%p190) target = $region16
        $region15: #{_lambda_.2} parent=11 // pred_region
          _
        $region16: #{_lambda_.2} parent=11 // pred_fallthru
          _
        // Predicated region
        $region17: #{_lambda_.2} parent=11 // pred_check
          %p193 = pneg %p147
        $region18: #{_lambda_.2} parent=11 // pred_check_branch
          %195 = sbr.rel (%p193) target = $region20
        $region19: #{_lambda_.2} parent=11 // pred_region
          _
        $region20: #{_lambda_.2} parent=11 // pred_fallthru
          _
      $region12: #{_lambda_.2} parent=5 // pred_fallthru
        _
      %p196 = scmp.lt.s32.totalorder %s11, 4
      // Predicated region
      $region21: #{_lambda_.2} parent=5 // pred_check
        %p197 = pneg %p196
      $region22: #{_lambda_.2} parent=5 // pred_check_branch
        %199 = sbr.rel (%p197) target = $region24
      $region23: #{_lambda_.2} parent=5 // pred_region
        // Predicated region
        $region25: #{_lambda_.2} parent=23 // pred_check
          %p200 = pneg %p64
        $region26: #{_lambda_.2} parent=23 // pred_check_branch
          %202 = sbr.rel (%p200) target = $region28
        $region27: #{_lambda_.2} parent=23 // pred_region
          %p203 = scmp.lt.s32.totalorder %s18, 1
          %s204 = scalar_select %p203, %s18, 1
          %s205 = smul.addr %s204, 3
          %s206 = smul.addr %s205, 8
          %s207 = scalar_lea.vmem %s1, %s206
        $region28: #{_lambda_.2} parent=23 // pred_fallthru
          _
        // Predicated region
        $region29: #{_lambda_.2} parent=23 // pred_check
          %p208 = pneg %p92
        $region30: #{_lambda_.2} parent=23 // pred_check_branch
          %210 = sbr.rel (%p208) target = $region32
        $region31: #{_lambda_.2} parent=23 // pred_region
          %p211 = scmp.lt.s32.totalorder %s18, 1
          %s212 = scalar_select %p211, %s18, 1
          %p213 = scmp.lt.s32.totalorder %s19, 1
          %s214 = scalar_select %p213, %s19, 1
          %s215 = smul.addr %s212, 2
          %s216 = sadd.s32 %s214, %s215
          %s217 = smul.addr %s216, 4
          %s218 = scalar_lea.vmem %s2, %s217
        $region32: #{_lambda_.2} parent=23 // pred_fallthru
          _
        // Predicated region
        $region33: #{_lambda_.2} parent=23 // pred_check
          %p219 = pneg %p120
        $region34: #{_lambda_.2} parent=23 // pred_check_branch
          %221 = sbr.rel (%p219) target = $region36
        $region35: #{_lambda_.2} parent=23 // pred_region
          %s222 = sand.u32 %s110, 1
          %s223 = sand.u32 %s110, 1
          %s224 = smul.addr %s223, 24
          %s225 = scalar_lea.vmem [#allocation2], %s224
          %s226 = smul.addr %s18, 6
          %s227 = sadd.s32 %s19, %s226
          %s228 = smul.addr %s227, 8
          %s229 = scalar_lea.vmem %s3, %s228
          // Predicated region
          $region37: #{_lambda_.2} parent=35 // pred_check
            _
          $region38: #{_lambda_.2} parent=35 // pred_check_branch
            %231 = sbr.rel (0) target = $region40
          $region39: #{_lambda_.2} parent=35 // pred_region
            // Predicated region
            $region41: #{_lambda_.2} parent=39 // pred_check
              _
            $region42: #{_lambda_.2} parent=39 // pred_check_branch
              %233 = sbr.rel (0) target = $region44
            $region43: #{_lambda_.2} parent=39 // pred_region
              // Predicated region
              $region56: #{_lambda_.2} parent=43 // pred_check
                _
              $region57: #{_lambda_.2} parent=43 // pred_check_branch
                %252 = sbr.rel (0) target = $region59
              $region58: #{_lambda_.2} parent=43 // pred_region
                loop: start=0, step=1, limit=1
                $region60: #{_lambda_.2} parent=58 // loop_pre_header
                  _
                $region61: #{_lambda_.2} parent=58 // loop_header
                  %s254 = sphi 0, %s258
                  %p255 = scmp.ge.s32.totalorder %s254, 1
                  %s259 = sphi %s229, %s229
                  %s260 = sphi %s225, %s225
                $region62: #{_lambda_.2} parent=58 // loop_header_branch
                  %257 = sbr.rel (%p255) target = $region66
                $region63: #{_lambda_.2} parent=58 // loop_body
                  %v261 = vld [vmem:[%s259] sm:$0xff]
                  %262 = vst [vmem:[%s260] sm:$0xff] %v261
                  %v263 = vld [vmem:[%s259 + $0x10] sm:$0xff]
                  %264 = vst [vmem:[%s260 + $0x8] sm:$0xff] %v263
                  %v265 = vld [vmem:[%s259 + $0x20] sm:$0xff]
                  %266 = vst [vmem:[%s260 + $0x10] sm:$0xff] %v265
                $region64: #{_lambda_.2} parent=58 // loop_footer
                  %s258 = sadd.s32 1, %s254
                $region65: #{_lambda_.2} parent=58 // loop_footer_branch
                  %253 = sbr.rel target = $region61
                $region66: #{_lambda_.2} parent=58 // loop_exit
                  _
              $region59: #{_lambda_.2} parent=43 // pred_fallthru
                _
              // Predicated region
              $region67: #{_lambda_.2} parent=43 // pred_check
                _
              $region68: #{_lambda_.2} parent=43 // pred_check_branch
                %268 = sbr.rel target = $region70
              $region69: #{_lambda_.2} parent=43 // pred_region
                _
              $region70: #{_lambda_.2} parent=43 // pred_fallthru
                _
            $region44: #{_lambda_.2} parent=39 // pred_fallthru
              _
            // Predicated region
            $region45: #{_lambda_.2} parent=39 // pred_check
              _
            $region46: #{_lambda_.2} parent=39 // pred_check_branch
              %235 = sbr.rel target = $region48
            $region47: #{_lambda_.2} parent=39 // pred_region
              loop: start=0, step=1, limit=1
              $region49: #{_lambda_.2} parent=47 // loop_pre_header
                _
              $region50: #{_lambda_.2} parent=47 // loop_header
                %s238 = sphi 0, %s242
                %p239 = scmp.ge.s32.totalorder %s238, 1
                %s243 = sphi %s229, %s229
                %s244 = sphi %s225, %s225
              $region51: #{_lambda_.2} parent=47 // loop_header_branch
                %241 = sbr.rel (%p239) target = $region55
              $region52: #{_lambda_.2} parent=47 // loop_body
                %v245 = vld [vmem:[%s243] sm:$0xff]
                %246 = vst [vmem:[%s244] sm:$0xff] %v245
                %v247 = vld [vmem:[%s243 + $0x10] sm:$0xff]
                %248 = vst [vmem:[%s244 + $0x8] sm:$0xff] %v247
                %v249 = vld [vmem:[%s243 + $0x20] sm:$0xff]
                %250 = vst [vmem:[%s244 + $0x10] sm:$0xff] %v249
              $region53: #{_lambda_.2} parent=47 // loop_footer
                %s242 = sadd.s32 1, %s238
              $region54: #{_lambda_.2} parent=47 // loop_footer_branch
                %237 = sbr.rel target = $region50
              $region55: #{_lambda_.2} parent=47 // loop_exit
                _
            $region48: #{_lambda_.2} parent=39 // pred_fallthru
              _
          $region40: #{_lambda_.2} parent=35 // pred_fallthru
            _
          %269 = vnop
        $region36: #{_lambda_.2} parent=23 // pred_fallthru
          _
      $region24: #{_lambda_.2} parent=5 // pred_fallthru
        _
      %p270 = scmp.le.s32.totalorder 1, %s11
      %p271 = scmp.lt.s32.totalorder %s11, 5
      %p272 = pnand %p270, %p271
      %p273 = pneg %p272
      // Predicated region
      $region71: #{_lambda_.2} parent=5 // pred_check
        _
      $region72: #{_lambda_.2} parent=5 // pred_check_branch
        %275 = sbr.rel (%p272) target = $region74
      $region73: #{_lambda_.2} parent=5 // pred_region
        %s276 = ssub.s32 %s11, 1
        %s277 = sand.u32 %s113, 1
        %s278 = sand.u32 %s113, 1
        %s279 = smul.addr %s278, 24
        %s280 = scalar_lea.vmem [#allocation2], %s279
        // Predicated region
        $region75: #{_lambda_.2} parent=73 // pred_check
          %p281 = pneg %p126
        $region76: #{_lambda_.2} parent=73 // pred_check_branch
          %283 = sbr.rel (%p281) target = $region78
        $region77: #{_lambda_.2} parent=73 // pred_region
          _
        $region78: #{_lambda_.2} parent=73 // pred_fallthru
          _
        %p284 = pneg %p44
        %p285 = pneg %p41
        %p286 = scmp.lt.s32.totalorder %s20, 1
        %s287 = scalar_select %p286, %s20, 1
        %s288 = smul.addr %s287, 3
        %s289 = smul.addr %s288, 8
        %s290 = scalar_lea.vmem %s1, %s289
        %p291 = pneg %p70
        %p292 = pneg %p67
        %p293 = scmp.lt.s32.totalorder %s20, 1
        %s294 = scalar_select %p293, %s20, 1
        %p295 = scmp.lt.s32.totalorder %s21, 1
        %s296 = scalar_select %p295, %s21, 1
        %s297 = smul.addr %s294, 2
        %s298 = sadd.s32 %s296, %s297
        %s299 = smul.addr %s298, 4
        %s300 = scalar_lea.vmem %s2, %s299
        %p301 = pneg %p98
        %p302 = pneg %p95
        %s303 = sand.u32 %s113, 1
        %s304 = sand.u32 %s113, 1
        %s305 = smul.addr %s304, 24
        %s306 = scalar_lea.vmem [#allocation2], %s305
        %p307 = pneg %p126
        %p308 = pneg %p123
        %p309 = pneg %p147
        %p310 = pneg %p144
        %p311 = pneg %p175
        %p312 = pneg %p172
        %s313 = sand.u32 %s162, 1
        %s314 = sand.u32 %s162, 1
        %s315 = smul.addr %s314, 24
        %s316 = scalar_lea.vmem [#allocation3], %s315
        %p317 = scmp.lt.s32.totalorder %s20, 1
        %s318 = scalar_select %p317, %s20, 1
        %s319 = smul.addr %s318, 3
        %s320 = smul.addr %s319, 8
        %s321 = scalar_lea.vmem %s1, %s320
        %p322 = scmp.lt.s32.totalorder %s20, 1
        %s323 = scalar_select %p322, %s20, 1
        %p324 = scmp.lt.s32.totalorder %s21, 1
        %s325 = scalar_select %p324, %s21, 1
        %s326 = smul.addr %s323, 2
        %s327 = sadd.s32 %s325, %s326
        %s328 = smul.addr %s327, 4
        %s329 = scalar_lea.vmem %s2, %s328
        %v330 = vld [vmem:[%s0] sm:$0xff]
        %v331 = vld [vmem:[%s0 + $0x8] sm:$0xff]
        %v332 = vld [vmem:[%s0 + $0x10] sm:$0xff]
        %v333 = vld [vmem:[%s321] sm:$0xff]
        %v334 = vld [vmem:[%s321 + $0x8] sm:$0xff]
        %v335 = vld [vmem:[%s321 + $0x10] sm:$0xff]
        %v336 = vmul.f32 %v330, %v333
        %v337 = vmul.f32 %v331, %v334
        %v338 = vmul.f32 %v332, %v335
        %v339 = vmul.f32 %v336, %v336
        %v340 = vmul.f32 %v337, %v337
        %v341 = vmul.f32 %v338, %v338
        %vm342 = vcmask 31744
        %v343 = vsel %vm342, %v339, 0.0
        %344 = vadd.xlane.f32.xlu0 %v343
        %v345 = vpop.xlane.xlu0 %344
        %v346 = vsel %vm342, %v340, 0.0
        %347 = vadd.xlane.f32.xlu0 %v346
        %v348 = vpop.xlane.xlu0 %347
        %v349 = vsel %vm342, %v341, 0.0
        %350 = vadd.xlane.f32.xlu0 %v349
        %v351 = vpop.xlane.xlu0 %350
        %v352 = vadd.f32 %v345, 1e-08
        %v353 = vadd.f32 %v348, 1e-08
        %v354 = vadd.f32 %v351, 1e-08
        %v355 = vrsqrt.pop %v352
        %v356 = vrsqrt.pop %v353
        %v357 = vrsqrt.pop %v354
        %v358 = vmul.f32 %v336, %v355
        %v359 = vmul.f32 %v337, %v356
        %v360 = vmul.f32 %v338, %v357
        %v361 = vld [vmem:[%s329] sm:$0xf]
        %v362 = vld [vmem:[%s280] sm:$0xff]
        %v363 = vld [vmem:[%s280 + $0x8] sm:$0xff]
        %v364 = vld [vmem:[%s280 + $0x10] sm:$0xff]
        %v366 = vsel %vm342, %v358, 0
        %v369 = vsel %vm342, %v359, 0
        %v372 = vsel %vm342, %v360, 0
        %vm374 = vcmask 1043456
        %v376 = vsel %vm374, %v361, 0
        %378 = vmatprep.subr.mxu0 0.0
        %379 = vmatpush1.msra.mxu0 %v376
        %380 = vmatprep.subr.mxu0 0.0
        %381 = vmatpush1.msra.mxu0 0.0
        %382 = vmatprep.subr.mxu0 0.0
        %383 = vmatpush1.msra.mxu0 0.0
        %384 = vmatprep.subr.mxu0 0.0
        %385 = vmatpush1.msra.mxu0 0.0
        %386 = vmatprep.subr.mxu0 0.0
        %387 = vmatpush1.msra.mxu0 0.0
        %388 = vmatprep.subr.mxu0 0.0
        %389 = vmatpush1.msra.mxu0 0.0
        %390 = vmatprep.subr.mxu0 0.0
        %391 = vmatpush1.msra.mxu0 0.0
        %392 = vmatprep.subr.mxu0 0.0
        %393 = vmatpush1.msra.mxu0 0.0
        %394 = vmatprep.subr.mxu0 0.0
        %395 = vmatpush1.msra.mxu0 0.0
        %396 = vmatprep.subr.mxu0 0.0
        %397 = vmatpush1.msra.mxu0 0.0
        %398 = vmatprep.subr.mxu0 0.0
        %399 = vmatpush1.msra.mxu0 0.0
        %400 = vmatprep.subr.mxu0 0.0
        %401 = vmatpush1.msra.mxu0 0.0
        %402 = vmatprep.subr.mxu0 0.0
        %403 = vmatpush1.msra.mxu0 0.0
        %404 = vmatprep.subr.mxu0 0.0
        %405 = vmatpush1.msra.mxu0 0.0
        %406 = vmatprep.subr.mxu0 0.0
        %407 = vmatpush1.msra.mxu0 0.0
        %408 = vmatprep.subr.mxu0 0.0
        %409 = vmatpush1.msra.mxu0 0.0
        %410 = vmatprep.subr.mxu0 0.0
        %411 = vmatpush1.msra.mxu0 0.0
        %412 = vmatprep.subr.mxu0 0.0
        %413 = vmatpush1.msra.mxu0 0.0
        %414 = vmatprep.subr.mxu0 0.0
        %415 = vmatpush1.msra.mxu0 0.0
        %416 = vmatprep.subr.mxu0 0.0
        %417 = vmatpush1.msra.mxu0 0.0
        %418 = vmatprep.subr.mxu0 0.0
        %419 = vmatpush1.msra.mxu0 0.0
        %420 = vmatprep.subr.mxu0 0.0
        %421 = vmatpush1.msra.mxu0 0.0
        %422 = vmatprep.subr.mxu0 0.0
        %423 = vmatpush1.msra.mxu0 0.0
        %424 = vmatprep.subr.mxu0 0.0
        %425 = vmatpush1.msra.mxu0 0.0
        %426 = vmatprep.subr.mxu0 0.0
        %427 = vmatpush1.msra.mxu0 0.0
        %428 = vmatprep.subr.mxu0 0.0
        %429 = vmatpush1.msra.mxu0 0.0
        %430 = vmatprep.subr.mxu0 0.0
        %431 = vmatpush1.msra.mxu0 0.0
        %432 = vmatprep.subr.mxu0 0.0
        %433 = vmatpush1.msra.mxu0 0.0
        %434 = vmatprep.subr.mxu0 0.0
        %435 = vmatpush1.msra.mxu0 0.0
        %436 = vmatprep.subr.mxu0 0.0
        %437 = vmatpush1.msra.mxu0 0.0
        %438 = vmatprep.subr.mxu0 0.0
        %439 = vmatpush1.msra.mxu0 0.0
        %440 = vmatprep.subr.mxu0 0.0
        %441 = vmatpush1.msra.mxu0 0.0
        %442 = vmatprep.mubr.f32.mxu0 0.0
        %443 = vmatmul.mubr.f32.gmra.mrb[0].mxu0 %v366
        %v444 = vpop.f32.mrb[0].mxu0
        %v445 = vadd.f32 %v362, %v444
        %v446 = vpop.f32.mrb[0].mxu0
        %447 = vmatprep.mubr.f32.mxu0 0.0
        %448 = vmatmul.mubr.f32.gmra.mrb[0].mxu0 %v369
        %v449 = vpop.f32.mrb[0].mxu0
        %v450 = vadd.f32 %v363, %v449
        %v451 = vpop.f32.mrb[0].mxu0
        %452 = vmatprep.mubr.f32.mxu0 0.0
        %453 = vmatmul.mubr.f32.gmra.mrb[0].mxu0 %v372
        %v454 = vpop.f32.mrb[0].mxu0
        %v455 = vadd.f32 %v364, %v454
        %v456 = vpop.f32.mrb[0].mxu0
        %457 = vdwg.mxu0
        %v458 = vld [vmem:[%s4] sm:$0xff]
        %v459 = vld [vmem:[%s4 + $0x8] sm:$0xff]
        %v460 = vld [vmem:[%s4 + $0x10] sm:$0xff]
        %462 = vset.pattern.permute.xlu0 0
        %463 = vperm.xlu0 %462, %v458
        %v464 = vpop.permute.xlu0 %463
        %467 = vset.pattern.permute.xlu0 0
        %468 = vperm.xlu0 %467, %v459
        %v469 = vpop.permute.xlu0 %468
        %472 = vset.pattern.permute.xlu0 0
        %473 = vperm.xlu0 %472, %v460
        %v474 = vpop.permute.xlu0 %473
        %v476 = vadd.f32 %v445, %v464
        %v477 = vadd.f32 %v450, %v469
        %v478 = vadd.f32 %v455, %v474
        %479 = vst [vmem:[%s316] sm:$0xff] %v476
        %480 = vst [vmem:[%s316 + $0x8] sm:$0xff] %v477
        %481 = vst [vmem:[%s316 + $0x10] sm:$0xff] %v478
        %s482 = sand.u32 %s162, 1
        %s483 = sand.u32 %s162, 1
        %s484 = smul.addr %s483, 24
        %s485 = scalar_lea.vmem [#allocation3], %s484
        // Predicated region
        $region79: #{_lambda_.2} parent=73 // pred_check
          %p486 = pneg %p172
        $region80: #{_lambda_.2} parent=73 // pred_check_branch
          %488 = sbr.rel (%p486) target = $region82
        $region81: #{_lambda_.2} parent=73 // pred_region
          %s489 = smul.addr %s20, 6
          %s490 = sadd.s32 %s21, %s489
          %s491 = smul.addr %s490, 8
          %s492 = scalar_lea.vmem %s5, %s491
          // Predicated region
          $region83: #{_lambda_.2} parent=81 // pred_check
            _
          $region84: #{_lambda_.2} parent=81 // pred_check_branch
            %494 = sbr.rel (0) target = $region86
          $region85: #{_lambda_.2} parent=81 // pred_region
            // Predicated region
            $region87: #{_lambda_.2} parent=85 // pred_check
              _
            $region88: #{_lambda_.2} parent=85 // pred_check_branch
              %496 = sbr.rel (0) target = $region90
            $region89: #{_lambda_.2} parent=85 // pred_region
              // Predicated region
              $region102: #{_lambda_.2} parent=89 // pred_check
                _
              $region103: #{_lambda_.2} parent=89 // pred_check_branch
                %515 = sbr.rel (0) target = $region105
              $region104: #{_lambda_.2} parent=89 // pred_region
                loop: start=0, step=1, limit=1
                $region106: #{_lambda_.2} parent=104 // loop_pre_header
                  _
                $region107: #{_lambda_.2} parent=104 // loop_header
                  %s517 = sphi 0, %s521
                  %p518 = scmp.ge.s32.totalorder %s517, 1
                  %s522 = sphi %s485, %s485
                  %s523 = sphi %s492, %s492
                $region108: #{_lambda_.2} parent=104 // loop_header_branch
                  %520 = sbr.rel (%p518) target = $region112
                $region109: #{_lambda_.2} parent=104 // loop_body
                  %v524 = vld [vmem:[%s522] sm:$0xff]
                  %525 = vst [vmem:[%s523] sm:$0xff] %v524
                  %v526 = vld [vmem:[%s522 + $0x8] sm:$0xff]
                  %527 = vst [vmem:[%s523 + $0x10] sm:$0xff] %v526
                  %v528 = vld [vmem:[%s522 + $0x10] sm:$0xff]
                  %529 = vst [vmem:[%s523 + $0x20] sm:$0xff] %v528
                $region110: #{_lambda_.2} parent=104 // loop_footer
                  %s521 = sadd.s32 1, %s517
                $region111: #{_lambda_.2} parent=104 // loop_footer_branch
                  %516 = sbr.rel target = $region107
                $region112: #{_lambda_.2} parent=104 // loop_exit
                  _
              $region105: #{_lambda_.2} parent=89 // pred_fallthru
                _
              // Predicated region
              $region113: #{_lambda_.2} parent=89 // pred_check
                _
              $region114: #{_lambda_.2} parent=89 // pred_check_branch
                %531 = sbr.rel target = $region116
              $region115: #{_lambda_.2} parent=89 // pred_region
                _
              $region116: #{_lambda_.2} parent=89 // pred_fallthru
                _
            $region90: #{_lambda_.2} parent=85 // pred_fallthru
              _
            // Predicated region
            $region91: #{_lambda_.2} parent=85 // pred_check
              _
            $region92: #{_lambda_.2} parent=85 // pred_check_branch
              %498 = sbr.rel target = $region94
            $region93: #{_lambda_.2} parent=85 // pred_region
              loop: start=0, step=1, limit=1
              $region95: #{_lambda_.2} parent=93 // loop_pre_header
                _
              $region96: #{_lambda_.2} parent=93 // loop_header
                %s501 = sphi 0, %s505
                %p502 = scmp.ge.s32.totalorder %s501, 1
                %s506 = sphi %s485, %s485
                %s507 = sphi %s492, %s492
              $region97: #{_lambda_.2} parent=93 // loop_header_branch
                %504 = sbr.rel (%p502) target = $region101
              $region98: #{_lambda_.2} parent=93 // loop_body
                %v508 = vld [vmem:[%s506] sm:$0xff]
                %509 = vst [vmem:[%s507] sm:$0xff] %v508
                %v510 = vld [vmem:[%s506 + $0x8] sm:$0xff]
                %511 = vst [vmem:[%s507 + $0x10] sm:$0xff] %v510
                %v512 = vld [vmem:[%s506 + $0x10] sm:$0xff]
                %513 = vst [vmem:[%s507 + $0x20] sm:$0xff] %v512
              $region99: #{_lambda_.2} parent=93 // loop_footer
                %s505 = sadd.s32 1, %s501
              $region100: #{_lambda_.2} parent=93 // loop_footer_branch
                %500 = sbr.rel target = $region96
              $region101: #{_lambda_.2} parent=93 // loop_exit
                _
            $region94: #{_lambda_.2} parent=85 // pred_fallthru
              _
          $region86: #{_lambda_.2} parent=81 // pred_fallthru
            _
          %532 = vnop
        $region82: #{_lambda_.2} parent=73 // pred_fallthru
          _
      $region74: #{_lambda_.2} parent=5 // pred_fallthru
        _
      %p533 = scmp.le.s32.totalorder 2, %s11
      // Predicated region
      $region117: #{_lambda_.2} parent=5 // pred_check
        %p534 = pneg %p533
      $region118: #{_lambda_.2} parent=5 // pred_check_branch
        %536 = sbr.rel (%p534) target = $region120
      $region119: #{_lambda_.2} parent=5 // pred_region
        %s537 = ssub.s32 %s11, 2
        // Predicated region
        $region121: #{_lambda_.2} parent=119 // pred_check
          %p538 = pneg %p178
        $region122: #{_lambda_.2} parent=119 // pred_check_branch
          %540 = sbr.rel (%p538) target = $region124
        $region123: #{_lambda_.2} parent=119 // pred_region
          %s541 = sand.u32 %s163, 1
          %s542 = sand.u32 %s163, 1
          %s543 = smul.addr %s542, 24
          %s544 = scalar_lea.vmem [#allocation3], %s543
        $region124: #{_lambda_.2} parent=119 // pred_fallthru
          _
      $region120: #{_lambda_.2} parent=5 // pred_fallthru
        _
    $region6: #{_lambda_.2} parent=1 // loop_footer
      %s15 = sadd.s32 1, %s11
    $region7: #{_lambda_.2} parent=1 // loop_footer_branch
      %10 = sbr.rel target = $region3
    $region8: #{_lambda_.2} parent=1 // loop_exit
      _

// kernel: _lambda_.3
$region0: #{_lambda_.3}
  #allocation0 [shape = 'u32[]', space=smem, size = 0x4, offset = 0x4, fixed_abs, tag = 'smem constant byte address 0x4 - core index']
  #allocation1 [shape = 'u32[144,128]{1,0:T(1,128)}', space=vmem, size = 0x12000, scoped, tag = 'internal scratch']
  #allocation2 [shape = 'f32[1]{0:T(128)S(6)}', space=smem, size = 0x200, scoped, tag = 'scoped memory for _lambda_.3']
  %s0 = inlined_call_operand.vmem [shape: f32[2,24,256], index: 0, kind: input, shape index: {}, may-alias: {0,1,2}]
  %s1 = inlined_call_operand.vmem [shape: f32[2,24,256], index: 1, kind: input, shape index: {}, may-alias: {0,1,2}]
  %s2 = inlined_call_operand.vmem [shape: f32[2,24,256], index: 2, kind: input, shape index: {}, may-alias: {0,1,2}]
  %s3 = inlined_call_operand.vmem [shape: f32[2,4,256], index: 3, kind: input, shape index: {}]
  %s4 = inlined_call_operand.vmem [shape: f32[4,8], index: 4, kind: input, shape index: {}]
  %s5 = inlined_call_operand.vmem [shape: f32[2,1,8], index: 5, kind: input, shape index: {}]
  %s6 = inlined_call_operand.vmem [shape: f32[2,1,256], index: 6, kind: input, shape index: {}]
  %s7 = inlined_call_operand.vmem [shape: f32[4,1], index: 7, kind: input, shape index: {}]
  %s8 = inlined_call_operand.<no memory space> [shape: f32[1], index: 8, kind: input, shape index: {}]
  %s9 = inlined_call_operand.vmem [shape: f32[2,4,256], index: 9, kind: output, shape index: {}]
  %s10 = sld [smem:[#allocation0]]
  $region69: #{_lambda_.3} parent=0
    _
  %s12 = ssub.s32 1, %s10
  %s13 = scalar_select 0, %s12, %s10
  %14 = sst [smem:[#allocation2]] %s8
  loop: start=0, step=1, limit=6
  $region2: #{_lambda_.3} parent=0 // loop_pre_header
    _
  $region3: #{_lambda_.3} parent=0 // loop_header
    %s16 = sphi 0, %s20
    %p17 = scmp.ge.s32.totalorder %s16, 6
    %s23 = sphi 0, %s35
    %s24 = sphi 0, %s31
    %s25 = sphi 0, %s23
    %s26 = sphi 0, %s24
    %s27 = sphi 0, %s25
    %s28 = sphi 0, %s26
    %s38 = sphi 0, %s40
    %s41 = sphi 0, %s38
    %s42 = sphi 0, %s41
    %s58 = sphi 0, %s42
    %s66 = sphi 0, %s68
    %s69 = sphi 0, %s66
    %s70 = sphi 0, %s69
    %s86 = sphi 0, %s70
    %s92 = sphi 0, %s94
    %s95 = sphi 0, %s92
    %s96 = sphi 0, %s95
    %s112 = sphi 0, %s96
    %s120 = sphi 0, %s122
    %s123 = sphi 0, %s120
    %s124 = sphi 0, %s123
    %s140 = sphi 0, %s124
    %s144 = sphi 0, %s144
    %s146 = sphi 0, %s144
    %s147 = sphi 0, %s146
    %s161 = sphi 0, %s147
    %s167 = sphi 0, %s169
    %s170 = sphi 0, %s167
    %s171 = sphi 0, %s170
    %s187 = sphi 0, %s171
    %s195 = sphi 0, %s197
    %s198 = sphi 0, %s195
    %s199 = sphi 0, %s198
    %s215 = sphi 0, %s199
    %s219 = sphi 0, %s219
    %s221 = sphi 0, %s219
    %s222 = sphi 0, %s221
    %s236 = sphi 0, %s222
    %s240 = sphi 0, %s240
    %s242 = sphi 0, %s240
    %s243 = sphi 0, %s242
    %s257 = sphi 0, %s243
    %s265 = sphi 0, %s267
    %s268 = sphi 0, %s265
    %s269 = sphi 0, %s268
    %s285 = sphi 0, %s269
  $region4: #{_lambda_.3} parent=0 // loop_header_branch
    %19 = sbr.rel (%p17) target = $region8
  $region5: #{_lambda_.3} parent=0 // loop_body
    %s21 = ssub.s32 %s16, 1
    %s22 = ssub.s32 %s16, 2
    %s29 = sadd.s32 1, %s24
    %p30 = scmp.ge.s32.totalorder %s29, 2
    %s31 = scalar_select %p30, 0, %s29
    %s32 = sadd.s32 1, %s23
    %s33 = scalar_select %p30, %s32, %s23
    %p34 = scmp.ge.s32.totalorder %s33, 2
    %s35 = scalar_select %p34, 0, %s33
    %s36 = ssub.s32 %s23, %s35
    %p37 = scmp.eq.s32.totalorder %s36, 0
    %s39 = sadd.s32 %s38, 1
    %s40 = scalar_select %p37, %s38, %s39
    %p43 = pneg %p37
    %p44 = scmp.eq.s32.totalorder %s16, 3
    %p45 = por %p43, %p44
    %p46 = scmp.ne.s32.totalorder %s38, %s41
    %p47 = scmp.eq.s32.totalorder %s16, 0
    %p48 = por %p46, %p47
    %p49 = scmp.ne.s32.totalorder %s38, %s41
    %p50 = scmp.eq.s32.totalorder %s21, 3
    %p51 = por %p49, %p50
    %p52 = scmp.ne.s32.totalorder %s41, %s42
    %p53 = scmp.eq.s32.totalorder %s21, 0
    %p54 = por %p52, %p53
    %p55 = scmp.ne.s32.totalorder %s41, %s42
    %p56 = scmp.eq.s32.totalorder %s22, 3
    %p57 = por %p55, %p56
    %p59 = scmp.ne.s32.totalorder %s42, %s58
    %p60 = scmp.eq.s32.totalorder %s22, 0
    %p61 = por %p59, %p60
    %s62 = ssub.s32 %s23, %s35
    %s63 = ssub.s32 %s24, %s31
    %s64 = sor.u32 %s62, %s63
    %p65 = scmp.eq.s32.totalorder %s64, 0
    %s67 = sadd.s32 %s66, 1
    %s68 = scalar_select %p65, %s66, %s67
    %p71 = pneg %p65
    %p72 = scmp.eq.s32.totalorder %s16, 3
    %p73 = por %p71, %p72
    %p74 = scmp.ne.s32.totalorder %s66, %s69
    %p75 = scmp.eq.s32.totalorder %s16, 0
    %p76 = por %p74, %p75
    %p77 = scmp.ne.s32.totalorder %s66, %s69
    %p78 = scmp.eq.s32.totalorder %s21, 3
    %p79 = por %p77, %p78
    %p80 = scmp.ne.s32.totalorder %s69, %s70
    %p81 = scmp.eq.s32.totalorder %s21, 0
    %p82 = por %p80, %p81
    %p83 = scmp.ne.s32.totalorder %s69, %s70
    %p84 = scmp.eq.s32.totalorder %s22, 3
    %p85 = por %p83, %p84
    %p87 = scmp.ne.s32.totalorder %s70, %s86
    %p88 = scmp.eq.s32.totalorder %s22, 0
    %p89 = por %p87, %p88
    %s90 = ssub.s32 %s23, %s35
    %p91 = scmp.eq.s32.totalorder %s90, 0
    %s93 = sadd.s32 %s92, 1
    %s94 = scalar_select %p91, %s92, %s93
    %p97 = pneg %p91
    %p98 = scmp.eq.s32.totalorder %s16, 3
    %p99 = por %p97, %p98
    %p100 = scmp.ne.s32.totalorder %s92, %s95
    %p101 = scmp.eq.s32.totalorder %s16, 0
    %p102 = por %p100, %p101
    %p103 = scmp.ne.s32.totalorder %s92, %s95
    %p104 = scmp.eq.s32.totalorder %s21, 3
    %p105 = por %p103, %p104
    %p106 = scmp.ne.s32.totalorder %s95, %s96
    %p107 = scmp.eq.s32.totalorder %s21, 0
    %p108 = por %p106, %p107
    %p109 = scmp.ne.s32.totalorder %s95, %s96
    %p110 = scmp.eq.s32.totalorder %s22, 3
    %p111 = por %p109, %p110
    %p113 = scmp.ne.s32.totalorder %s96, %s112
    %p114 = scmp.eq.s32.totalorder %s22, 0
    %p115 = por %p113, %p114
    %s116 = ssub.s32 %s23, %s35
    %s117 = ssub.s32 %s24, %s31
    %s118 = sor.u32 %s116, %s117
    %p119 = scmp.eq.s32.totalorder %s118, 0
    %s121 = sadd.s32 %s120, 1
    %s122 = scalar_select %p119, %s120, %s121
    %p125 = pneg %p119
    %p126 = scmp.eq.s32.totalorder %s16, 3
    %p127 = por %p125, %p126
    %p128 = scmp.ne.s32.totalorder %s120, %s123
    %p129 = scmp.eq.s32.totalorder %s16, 0
    %p130 = por %p128, %p129
    %p131 = scmp.ne.s32.totalorder %s120, %s123
    %p132 = scmp.eq.s32.totalorder %s21, 3
    %p133 = por %p131, %p132
    %p134 = scmp.ne.s32.totalorder %s123, %s124
    %p135 = scmp.eq.s32.totalorder %s21, 0
    %p136 = por %p134, %p135
    %p137 = scmp.ne.s32.totalorder %s123, %s124
    %p138 = scmp.eq.s32.totalorder %s22, 3
    %p139 = por %p137, %p138
    %p141 = scmp.ne.s32.totalorder %s124, %s140
    %p142 = scmp.eq.s32.totalorder %s22, 0
    %p143 = por %p141, %p142
    %s145 = sadd.s32 %s144, 1
    %p148 = scmp.eq.s32.totalorder %s16, 3
    %p149 = scmp.ne.s32.totalorder %s144, %s146
    %p150 = scmp.eq.s32.totalorder %s16, 0
    %p151 = por %p149, %p150
    %p152 = scmp.ne.s32.totalorder %s144, %s146
    %p153 = scmp.eq.s32.totalorder %s21, 3
    %p154 = por %p152, %p153
    %p155 = scmp.ne.s32.totalorder %s146, %s147
    %p156 = scmp.eq.s32.totalorder %s21, 0
    %p157 = por %p155, %p156
    %p158 = scmp.ne.s32.totalorder %s146, %s147
    %p159 = scmp.eq.s32.totalorder %s22, 3
    %p160 = por %p158, %p159
    %p162 = scmp.ne.s32.totalorder %s147, %s161
    %p163 = scmp.eq.s32.totalorder %s22, 0
    %p164 = por %p162, %p163
    %s165 = ssub.s32 %s23, %s35
    %p166 = scmp.eq.s32.totalorder %s165, 0
    %s168 = sadd.s32 %s167, 1
    %s169 = scalar_select %p166, %s167, %s168
    %p172 = pneg %p166
    %p173 = scmp.eq.s32.totalorder %s16, 3
    %p174 = por %p172, %p173
    %p175 = scmp.ne.s32.totalorder %s167, %s170
    %p176 = scmp.eq.s32.totalorder %s16, 0
    %p177 = por %p175, %p176
    %p178 = scmp.ne.s32.totalorder %s167, %s170
    %p179 = scmp.eq.s32.totalorder %s21, 3
    %p180 = por %p178, %p179
    %p181 = scmp.ne.s32.totalorder %s170, %s171
    %p182 = scmp.eq.s32.totalorder %s21, 0
    %p183 = por %p181, %p182
    %p184 = scmp.ne.s32.totalorder %s170, %s171
    %p185 = scmp.eq.s32.totalorder %s22, 3
    %p186 = por %p184, %p185
    %p188 = scmp.ne.s32.totalorder %s171, %s187
    %p189 = scmp.eq.s32.totalorder %s22, 0
    %p190 = por %p188, %p189
    %s191 = ssub.s32 %s23, %s35
    %s192 = ssub.s32 %s24, %s31
    %s193 = sor.u32 %s191, %s192
    %p194 = scmp.eq.s32.totalorder %s193, 0
    %s196 = sadd.s32 %s195, 1
    %s197 = scalar_select %p194, %s195, %s196
    %p200 = pneg %p194
    %p201 = scmp.eq.s32.totalorder %s16, 3
    %p202 = por %p200, %p201
    %p203 = scmp.ne.s32.totalorder %s195, %s198
    %p204 = scmp.eq.s32.totalorder %s16, 0
    %p205 = por %p203, %p204
    %p206 = scmp.ne.s32.totalorder %s195, %s198
    %p207 = scmp.eq.s32.totalorder %s21, 3
    %p208 = por %p206, %p207
    %p209 = scmp.ne.s32.totalorder %s198, %s199
    %p210 = scmp.eq.s32.totalorder %s21, 0
    %p211 = por %p209, %p210
    %p212 = scmp.ne.s32.totalorder %s198, %s199
    %p213 = scmp.eq.s32.totalorder %s22, 3
    %p214 = por %p212, %p213
    %p216 = scmp.ne.s32.totalorder %s199, %s215
    %p217 = scmp.eq.s32.totalorder %s22, 0
    %p218 = por %p216, %p217
    %s220 = sadd.s32 %s219, 1
    %p223 = scmp.eq.s32.totalorder %s16, 3
    %p224 = scmp.ne.s32.totalorder %s219, %s221
    %p225 = scmp.eq.s32.totalorder %s16, 0
    %p226 = por %p224, %p225
    %p227 = scmp.ne.s32.totalorder %s219, %s221
    %p228 = scmp.eq.s32.totalorder %s21, 3
    %p229 = por %p227, %p228
    %p230 = scmp.ne.s32.totalorder %s221, %s222
    %p231 = scmp.eq.s32.totalorder %s21, 0
    %p232 = por %p230, %p231
    %p233 = scmp.ne.s32.totalorder %s221, %s222
    %p234 = scmp.eq.s32.totalorder %s22, 3
    %p235 = por %p233, %p234
    %p237 = scmp.ne.s32.totalorder %s222, %s236
    %p238 = scmp.eq.s32.totalorder %s22, 0
    %p239 = por %p237, %p238
    %s241 = sadd.s32 %s240, 1
    %p244 = scmp.eq.s32.totalorder %s16, 3
    %p245 = scmp.ne.s32.totalorder %s240, %s242
    %p246 = scmp.eq.s32.totalorder %s16, 0
    %p247 = por %p245, %p246
    %p248 = scmp.ne.s32.totalorder %s240, %s242
    %p249 = scmp.eq.s32.totalorder %s21, 3
    %p250 = por %p248, %p249
    %p251 = scmp.ne.s32.totalorder %s242, %s243
    %p252 = scmp.eq.s32.totalorder %s21, 0
    %p253 = por %p251, %p252
    %p254 = scmp.ne.s32.totalorder %s242, %s243
    %p255 = scmp.eq.s32.totalorder %s22, 3
    %p256 = por %p254, %p255
    %p258 = scmp.ne.s32.totalorder %s243, %s257
    %p259 = scmp.eq.s32.totalorder %s22, 0
    %p260 = por %p258, %p259
    %s261 = ssub.s32 %s23, %s35
    %s262 = ssub.s32 %s24, %s31
    %s263 = sor.u32 %s261, %s262
    %p264 = scmp.eq.s32.totalorder %s263, 0
    %s266 = sadd.s32 %s265, 1
    %s267 = scalar_select %p264, %s265, %s266
    %p270 = pneg %p264
    %p271 = scmp.eq.s32.totalorder %s16, 3
    %p272 = por %p270, %p271
    %p273 = scmp.ne.s32.totalorder %s265, %s268
    %p274 = scmp.eq.s32.totalorder %s16, 0
    %p275 = por %p273, %p274
    %p276 = scmp.ne.s32.totalorder %s265, %s268
    %p277 = scmp.eq.s32.totalorder %s21, 3
    %p278 = por %p276, %p277
    %p279 = scmp.ne.s32.totalorder %s268, %s269
    %p280 = scmp.eq.s32.totalorder %s21, 0
    %p281 = por %p279, %p280
    %p282 = scmp.ne.s32.totalorder %s268, %s269
    %p283 = scmp.eq.s32.totalorder %s22, 3
    %p284 = por %p282, %p283
    %p286 = scmp.ne.s32.totalorder %s269, %s285
    %p287 = scmp.eq.s32.totalorder %s22, 0
    %p288 = por %p286, %p287
    %p289 = scmp.le.s32.totalorder 1, %s16
    %p290 = scmp.lt.s32.totalorder %s16, 5
    %p291 = pnand %p289, %p290
    %p292 = pneg %p291
    // Predicated region
    $region9: #{_lambda_.3} parent=5 // pred_check
      _
    $region10: #{_lambda_.3} parent=5 // pred_check_branch
      %294 = sbr.rel (%p291) target = $region12
    $region11: #{_lambda_.3} parent=5 // pred_region
      %s295 = ssub.s32 %s16, 1
      // Predicated region
      $region13: #{_lambda_.3} parent=11 // pred_check
        %p296 = pneg %p157
      $region14: #{_lambda_.3} parent=11 // pred_check_branch
        %298 = sbr.rel (%p296) target = $region16
      $region15: #{_lambda_.3} parent=11 // pred_region
        _
      $region16: #{_lambda_.3} parent=11 // pred_fallthru
        _
      // Predicated region
      $region17: #{_lambda_.3} parent=11 // pred_check
        %p299 = pneg %p232
      $region18: #{_lambda_.3} parent=11 // pred_check_branch
        %301 = sbr.rel (%p299) target = $region20
      $region19: #{_lambda_.3} parent=11 // pred_region
        _
      $region20: #{_lambda_.3} parent=11 // pred_fallthru
        _
      // Predicated region
      $region21: #{_lambda_.3} parent=11 // pred_check
        %p302 = pneg %p253
      $region22: #{_lambda_.3} parent=11 // pred_check_branch
        %304 = sbr.rel (%p302) target = $region24
      $region23: #{_lambda_.3} parent=11 // pred_region
        _
      $region24: #{_lambda_.3} parent=11 // pred_fallthru
        _
    $region12: #{_lambda_.3} parent=5 // pred_fallthru
      _
    %p305 = scmp.lt.s32.totalorder %s16, 4
    // Predicated region
    $region25: #{_lambda_.3} parent=5 // pred_check
      %p306 = pneg %p305
    $region26: #{_lambda_.3} parent=5 // pred_check_branch
      %308 = sbr.rel (%p306) target = $region28
    $region27: #{_lambda_.3} parent=5 // pred_region
      // Predicated region
      $region29: #{_lambda_.3} parent=27 // pred_check
        %p309 = pneg %p48
      $region30: #{_lambda_.3} parent=27 // pred_check_branch
        %311 = sbr.rel (%p309) target = $region32
      $region31: #{_lambda_.3} parent=27 // pred_region
        %p312 = scmp.lt.s32.totalorder %s23, 1
        %s313 = scalar_select %p312, %s23, 1
        %s314 = smul.addr %s313, 6
        %s315 = smul.addr %s314, 8
        %s316 = scalar_lea.vmem %s0, %s315
      $region32: #{_lambda_.3} parent=27 // pred_fallthru
        _
      // Predicated region
      $region33: #{_lambda_.3} parent=27 // pred_check
        %p317 = pneg %p76
      $region34: #{_lambda_.3} parent=27 // pred_check_branch
        %319 = sbr.rel (%p317) target = $region36
      $region35: #{_lambda_.3} parent=27 // pred_region
        %p320 = scmp.lt.s32.totalorder %s23, 1
        %s321 = scalar_select %p320, %s23, 1
        %p322 = scmp.lt.s32.totalorder %s24, 1
        %s323 = scalar_select %p322, %s24, 1
        %s324 = sadd.s32 %s323, 2
        %s325 = smul.addr %s321, 6
        %s326 = sadd.s32 %s324, %s325
        %s327 = smul.addr %s326, 8
        %s328 = scalar_lea.vmem %s1, %s327
      $region36: #{_lambda_.3} parent=27 // pred_fallthru
        _
      // Predicated region
      $region37: #{_lambda_.3} parent=27 // pred_check
        %p329 = pneg %p102
      $region38: #{_lambda_.3} parent=27 // pred_check_branch
        %331 = sbr.rel (%p329) target = $region40
      $region39: #{_lambda_.3} parent=27 // pred_region
        %p332 = scmp.lt.s32.totalorder %s23, 1
        %s333 = scalar_select %p332, %s23, 1
        %s334 = smul.addr %s333, 6
        %s335 = sadd.s32 4, %s334
        %s336 = smul.addr %s335, 8
        %s337 = scalar_lea.vmem %s2, %s336
      $region40: #{_lambda_.3} parent=27 // pred_fallthru
        _
      // Predicated region
      $region41: #{_lambda_.3} parent=27 // pred_check
        %p338 = pneg %p130
      $region42: #{_lambda_.3} parent=27 // pred_check_branch
        %340 = sbr.rel (%p338) target = $region44
      $region43: #{_lambda_.3} parent=27 // pred_region
        %p341 = scmp.lt.s32.totalorder %s23, 1
        %s342 = scalar_select %p341, %s23, 1
        %p343 = scmp.lt.s32.totalorder %s24, 1
        %s344 = scalar_select %p343, %s24, 1
        %s345 = smul.addr %s342, 2
        %s346 = sadd.s32 %s344, %s345
        %s347 = smul.addr %s346, 4
        %s348 = scalar_lea.vmem %s3, %s347
      $region44: #{_lambda_.3} parent=27 // pred_fallthru
        _
      // Predicated region
      $region45: #{_lambda_.3} parent=27 // pred_check
        %p349 = pneg %p177
      $region46: #{_lambda_.3} parent=27 // pred_check_branch
        %351 = sbr.rel (%p349) target = $region48
      $region47: #{_lambda_.3} parent=27 // pred_region
        %p352 = scmp.lt.s32.totalorder %s23, 1
        %s353 = scalar_select %p352, %s23, 1
        %s354 = scalar_lea.vmem %s5, %s353
      $region48: #{_lambda_.3} parent=27 // pred_fallthru
        _
      // Predicated region
      $region49: #{_lambda_.3} parent=27 // pred_check
        %p355 = pneg %p205
      $region50: #{_lambda_.3} parent=27 // pred_check_branch
        %357 = sbr.rel (%p355) target = $region52
      $region51: #{_lambda_.3} parent=27 // pred_region
        %p358 = scmp.lt.s32.totalorder %s23, 1
        %s359 = scalar_select %p358, %s23, 1
        %p360 = scmp.lt.s32.totalorder %s24, 1
        %s361 = scalar_select %p360, %s24, 1
        %s362 = smul.addr %s359, 2
        %s363 = sadd.s32 %s361, %s362
        %s364 = scalar_lea.vmem %s6, %s363
      $region52: #{_lambda_.3} parent=27 // pred_fallthru
        _
    $region28: #{_lambda_.3} parent=5 // pred_fallthru
      _
    %p365 = scmp.le.s32.totalorder 1, %s16
    %p366 = scmp.lt.s32.totalorder %s16, 5
    %p367 = pnand %p365, %p366
    %p368 = pneg %p367
    // Predicated region
    $region53: #{_lambda_.3} parent=5 // pred_check
      _
    $region54: #{_lambda_.3} parent=5 // pred_check_branch
      %370 = sbr.rel (%p367) target = $region56
    $region55: #{_lambda_.3} parent=5 // pred_region
      %s371 = ssub.s32 %s16, 1
      %p372 = scmp.lt.s32.totalorder %s25, 1
      %s373 = scalar_select %p372, %s25, 1
      %s374 = smul.addr %s373, 6
      %s375 = smul.addr %s374, 8
      %s376 = scalar_lea.vmem %s0, %s375
      %p377 = pneg %p54
      %p378 = pneg %p51
      %p379 = scmp.lt.s32.totalorder %s25, 1
      %s380 = scalar_select %p379, %s25, 1
      %p381 = scmp.lt.s32.totalorder %s26, 1
      %s382 = scalar_select %p381, %s26, 1
      %s383 = sadd.s32 %s382, 2
      %s384 = smul.addr %s380, 6
      %s385 = sadd.s32 %s383, %s384
      %s386 = smul.addr %s385, 8
      %s387 = scalar_lea.vmem %s1, %s386
      %p388 = pneg %p82
      %p389 = pneg %p79
      %p390 = scmp.lt.s32.totalorder %s25, 1
      %s391 = scalar_select %p390, %s25, 1
      %s392 = smul.addr %s391, 6
      %s393 = sadd.s32 4, %s392
      %s394 = smul.addr %s393, 8
      %s395 = scalar_lea.vmem %s2, %s394
      %p396 = pneg %p108
      %p397 = pneg %p105
      %p398 = scmp.lt.s32.totalorder %s25, 1
      %s399 = scalar_select %p398, %s25, 1
      %p400 = scmp.lt.s32.totalorder %s26, 1
      %s401 = scalar_select %p400, %s26, 1
      %s402 = smul.addr %s399, 2
      %s403 = sadd.s32 %s401, %s402
      %s404 = smul.addr %s403, 4
      %s405 = scalar_lea.vmem %s3, %s404
      %p406 = pneg %p136
      %p407 = pneg %p133
      %p408 = pneg %p157
      %p409 = pneg %p154
      %p410 = scmp.lt.s32.totalorder %s25, 1
      %s411 = scalar_select %p410, %s25, 1
      %s412 = scalar_lea.vmem %s5, %s411
      %p413 = pneg %p183
      %p414 = pneg %p180
      %p415 = scmp.lt.s32.totalorder %s25, 1
      %s416 = scalar_select %p415, %s25, 1
      %p417 = scmp.lt.s32.totalorder %s26, 1
      %s418 = scalar_select %p417, %s26, 1
      %s419 = smul.addr %s416, 2
      %s420 = sadd.s32 %s418, %s419
      %s421 = scalar_lea.vmem %s6, %s420
      %p422 = pneg %p211
      %p423 = pneg %p208
      %p424 = pneg %p232
      %p425 = pneg %p229
      %p426 = pneg %p253
      %p427 = pneg %p250
      %p428 = pneg %p281
      %p429 = pneg %p278
      %p430 = scmp.lt.s32.totalorder %s25, 1
      %s431 = scalar_select %p430, %s25, 1
      %p432 = scmp.lt.s32.totalorder %s26, 1
      %s433 = scalar_select %p432, %s26, 1
      %s434 = smul.addr %s431, 2
      %s435 = sadd.s32 %s433, %s434
      %s436 = smul.addr %s435, 4
      %s437 = scalar_lea.vmem %s9, %s436
      %p438 = scmp.lt.s32.totalorder %s25, 1
      %s439 = scalar_select %p438, %s25, 1
      %s440 = smul.addr %s439, 6
      %s441 = smul.addr %s440, 8
      %s442 = scalar_lea.vmem %s0, %s441
      %p443 = scmp.lt.s32.totalorder %s25, 1
      %s444 = scalar_select %p443, %s25, 1
      %p445 = scmp.lt.s32.totalorder %s26, 1
      %s446 = scalar_select %p445, %s26, 1
      %s447 = sadd.s32 %s446, 2
      %s448 = smul.addr %s444, 6
      %s449 = sadd.s32 %s447, %s448
      %s450 = smul.addr %s449, 8
      %s451 = scalar_lea.vmem %s1, %s450
      %p452 = scmp.lt.s32.totalorder %s25, 1
      %s453 = scalar_select %p452, %s25, 1
      %s454 = smul.addr %s453, 6
      %s455 = sadd.s32 4, %s454
      %s456 = smul.addr %s455, 8
      %s457 = scalar_lea.vmem %s2, %s456
      %p458 = scmp.lt.s32.totalorder %s25, 1
      %s459 = scalar_select %p458, %s25, 1
      %p460 = scmp.lt.s32.totalorder %s26, 1
      %s461 = scalar_select %p460, %s26, 1
      %s462 = smul.addr %s459, 2
      %s463 = sadd.s32 %s461, %s462
      %s464 = smul.addr %s463, 4
      %s465 = scalar_lea.vmem %s3, %s464
      %p466 = scmp.lt.s32.totalorder %s25, 1
      %s467 = scalar_select %p466, %s25, 1
      %s468 = scalar_lea.vmem %s5, %s467
      %p469 = scmp.lt.s32.totalorder %s25, 1
      %s470 = scalar_select %p469, %s25, 1
      %p471 = scmp.lt.s32.totalorder %s26, 1
      %s472 = scalar_select %p471, %s26, 1
      %s473 = smul.addr %s470, 2
      %s474 = sadd.s32 %s472, %s473
      %s475 = scalar_lea.vmem %s6, %s474
      %p476 = scmp.lt.s32.totalorder %s25, 1
      %s477 = scalar_select %p476, %s25, 1
      %p478 = scmp.lt.s32.totalorder %s26, 1
      %s479 = scalar_select %p478, %s26, 1
      %s480 = smul.addr %s477, 2
      %s481 = sadd.s32 %s479, %s480
      %s482 = smul.addr %s481, 4
      %s483 = scalar_lea.vmem %s9, %s482
      %v484 = vld [vmem:[%s442] sm:$0xff]
      %v485 = vld [vmem:[%s442 + $0x8] sm:$0xff]
      %v486 = vld [vmem:[%s451] sm:$0xff]
      %v487 = vld [vmem:[%s457] sm:$0xff]
      %v488 = vld [vmem:[%s457 + $0x8] sm:$0xff]
      %489 = vxpose.xlu0.b32.start [1/16] %v484, 128
      %490 = vxpose.xlu0.b32.cont [2/16] 0.0, 128
      %491 = vxpose.xlu0.b32.cont [3/16] 0.0, 128
      %492 = vxpose.xlu0.b32.cont [4/16] 0.0, 128
      %493 = vxpose.xlu0.b32.cont [5/16] 0.0, 128
      %494 = vxpose.xlu0.b32.cont [6/16] 0.0, 128
      %495 = vxpose.xlu0.b32.cont [7/16] 0.0, 128
      %496 = vxpose.xlu0.b32.cont [8/16] 0.0, 128
      %497 = vxpose.xlu0.b32.cont [9/16] 0.0, 128
      %498 = vxpose.xlu0.b32.cont [10/16] 0.0, 128
      %499 = vxpose.xlu0.b32.cont [11/16] 0.0, 128
      %500 = vxpose.xlu0.b32.cont [12/16] 0.0, 128
      %501 = vxpose.xlu0.b32.cont [13/16] 0.0, 128
      %502 = vxpose.xlu0.b32.cont [14/16] 0.0, 128
      %503 = vxpose.xlu0.b32.cont [15/16] 0.0, 128
      %504 = vxpose.xlu0.b32.end [16/16] 0.0, 128
      %v505 = vpop.trf.xlu0
      %v506 = vpop.trf.xlu0
      %v507 = vpop.trf.xlu0
      %v508 = vpop.trf.xlu0
      %v509 = vpop.trf.xlu0
      %v510 = vpop.trf.xlu0
      %v511 = vpop.trf.xlu0
      %v512 = vpop.trf.xlu0
      %v513 = vpop.trf.xlu0
      %v514 = vpop.trf.xlu0
      %v515 = vpop.trf.xlu0
      %v516 = vpop.trf.xlu0
      %v517 = vpop.trf.xlu0
      %v518 = vpop.trf.xlu0
      %v519 = vpop.trf.xlu0
      %v520 = vpop.trf.xlu0
      %521 = vxpose.xlu0.b32.start [1/16] %v485, 128
      %522 = vxpose.xlu0.b32.cont [2/16] 0.0, 128
      %523 = vxpose.xlu0.b32.cont [3/16] 0.0, 128
      %524 = vxpose.xlu0.b32.cont [4/16] 0.0, 128
      %525 = vxpose.xlu0.b32.cont [5/16] 0.0, 128
      %526 = vxpose.xlu0.b32.cont [6/16] 0.0, 128
      %527 = vxpose.xlu0.b32.cont [7/16] 0.0, 128
      %528 = vxpose.xlu0.b32.cont [8/16] 0.0, 128
      %529 = vxpose.xlu0.b32.cont [9/16] 0.0, 128
      %530 = vxpose.xlu0.b32.cont [10/16] 0.0, 128
      %531 = vxpose.xlu0.b32.cont [11/16] 0.0, 128
      %532 = vxpose.xlu0.b32.cont [12/16] 0.0, 128
      %533 = vxpose.xlu0.b32.cont [13/16] 0.0, 128
      %534 = vxpose.xlu0.b32.cont [14/16] 0.0, 128
      %535 = vxpose.xlu0.b32.cont [15/16] 0.0, 128
      %536 = vxpose.xlu0.b32.end [16/16] 0.0, 128
      %v537 = vpop.trf.xlu0
      %v538 = vpop.trf.xlu0
      %v539 = vpop.trf.xlu0
      %v540 = vpop.trf.xlu0
      %v541 = vpop.trf.xlu0
      %v542 = vpop.trf.xlu0
      %v543 = vpop.trf.xlu0
      %v544 = vpop.trf.xlu0
      %v545 = vpop.trf.xlu0
      %v546 = vpop.trf.xlu0
      %v547 = vpop.trf.xlu0
      %v548 = vpop.trf.xlu0
      %v549 = vpop.trf.xlu0
      %v550 = vpop.trf.xlu0
      %v551 = vpop.trf.xlu0
      %v552 = vpop.trf.xlu0
      %vm553 = vcmask 64512
      %v555 = vsel %vm553, %v505, 0
      %v558 = vsel %vm553, %v506, 0
      %v561 = vsel %vm553, %v507, 0
      %v564 = vsel %vm553, %v508, 0
      %v567 = vsel %vm553, %v509, 0
      %v570 = vsel %vm553, %v510, 0
      %v573 = vsel %vm553, %v511, 0
      %v576 = vsel %vm553, %v512, 0
      %v579 = vsel %vm553, %v513, 0
      %v582 = vsel %vm553, %v514, 0
      %v585 = vsel %vm553, %v515, 0
      %v588 = vsel %vm553, %v516, 0
      %v591 = vsel %vm553, %v517, 0
      %v594 = vsel %vm553, %v518, 0
      %v597 = vsel %vm553, %v519, 0
      %v600 = vsel %vm553, %v520, 0
      %v603 = vsel %vm553, %v537, 0
      %v606 = vsel %vm553, %v538, 0
      %v609 = vsel %vm553, %v539, 0
      %v612 = vsel %vm553, %v540, 0
      %v615 = vsel %vm553, %v541, 0
      %v618 = vsel %vm553, %v542, 0
      %v621 = vsel %vm553, %v543, 0
      %v624 = vsel %vm553, %v544, 0
      %v627 = vsel %vm553, %v545, 0
      %v630 = vsel %vm553, %v546, 0
      %v633 = vsel %vm553, %v547, 0
      %v636 = vsel %vm553, %v548, 0
      %v639 = vsel %vm553, %v549, 0
      %v642 = vsel %vm553, %v550, 0
      %v645 = vsel %vm553, %v551, 0
      %v648 = vsel %vm553, %v552, 0
      %650 = vmatprep.subr.mxu0 0.0
      %651 = vmatpush1.msra.mxu0 %v486
      %652 = vmatprep.subr.mxu0 0.0
      %653 = vmatpush1.msra.mxu0 0.0
      %654 = vmatprep.subr.mxu0 0.0
      %655 = vmatpush1.msra.mxu0 0.0
      %656 = vmatprep.subr.mxu0 0.0
      %657 = vmatpush1.msra.mxu0 0.0
      %658 = vmatprep.subr.mxu0 0.0
      %659 = vmatpush1.msra.mxu0 0.0
      %660 = vmatprep.subr.mxu0 0.0
      %661 = vmatpush1.msra.mxu0 0.0
      %662 = vmatprep.subr.mxu0 0.0
      %663 = vmatpush1.msra.mxu0 0.0
      %664 = vmatprep.subr.mxu0 0.0
      %665 = vmatpush1.msra.mxu0 0.0
      %666 = vmatprep.subr.mxu0 0.0
      %667 = vmatpush1.msra.mxu0 0.0
      %668 = vmatprep.subr.mxu0 0.0
      %669 = vmatpush1.msra.mxu0 0.0
      %670 = vmatprep.subr.mxu0 0.0
      %671 = vmatpush1.msra.mxu0 0.0
      %672 = vmatprep.subr.mxu0 0.0
      %673 = vmatpush1.msra.mxu0 0.0
      %674 = vmatprep.subr.mxu0 0.0
      %675 = vmatpush1.msra.mxu0 0.0
      %676 = vmatprep.subr.mxu0 0.0
      %677 = vmatpush1.msra.mxu0 0.0
      %678 = vmatprep.subr.mxu0 0.0
      %679 = vmatpush1.msra.mxu0 0.0
      %680 = vmatprep.subr.mxu0 0.0
      %681 = vmatpush1.msra.mxu0 0.0
      %682 = vmatprep.subr.mxu0 0.0
      %683 = vmatpush1.msra.mxu0 0.0
      %684 = vmatprep.subr.mxu0 0.0
      %685 = vmatpush1.msra.mxu0 0.0
      %686 = vmatprep.subr.mxu0 0.0
      %687 = vmatpush1.msra.mxu0 0.0
      %688 = vmatprep.subr.mxu0 0.0
      %689 = vmatpush1.msra.mxu0 0.0
      %690 = vmatprep.subr.mxu0 0.0
      %691 = vmatpush1.msra.mxu0 0.0
      %692 = vmatprep.subr.mxu0 0.0
      %693 = vmatpush1.msra.mxu0 0.0
      %694 = vmatprep.subr.mxu0 0.0
      %695 = vmatpush1.msra.mxu0 0.0
      %696 = vmatprep.subr.mxu0 0.0
      %697 = vmatpush1.msra.mxu0 0.0
      %698 = vmatprep.subr.mxu0 0.0
      %699 = vmatpush1.msra.mxu0 0.0
      %700 = vmatprep.subr.mxu0 0.0
      %701 = vmatpush1.msra.mxu0 0.0
      %702 = vmatprep.subr.mxu0 0.0
      %703 = vmatpush1.msra.mxu0 0.0
      %704 = vmatprep.subr.mxu0 0.0
      %705 = vmatpush1.msra.mxu0 0.0
      %706 = vmatprep.subr.mxu0 0.0
      %707 = vmatpush1.msra.mxu0 0.0
      %708 = vmatprep.subr.mxu0 0.0
      %709 = vmatpush1.msra.mxu0 0.0
      %710 = vmatprep.subr.mxu0 0.0
      %711 = vmatpush1.msra.mxu0 0.0
      %712 = vmatprep.subr.mxu0 0.0
      %713 = vmatpush1.msra.mxu0 0.0
      %714 = vmatprep.mubr.f32.mxu0 0.0
      %715 = vmatmul.mubr.f32.gmra.mrb[0].mxu0 %v555
      %v716 = vpop.f32.mrb[0].mxu0
      %v717 = vadd.f32 0.0, %v716
      %v718 = vpop.f32.mrb[0].mxu0
      %719 = vmatprep.mubr.f32.mxu0 0.0
      %720 = vmatmul.mubr.f32.gmra.mrb[0].mxu0 %v558
      %v721 = vpop.f32.mrb[0].mxu0
      %v722 = vadd.f32 0.0, %v721
      %v723 = vpop.f32.mrb[0].mxu0
      %724 = vmatprep.mubr.f32.mxu0 0.0
      %725 = vmatmul.mubr.f32.gmra.mrb[0].mxu0 %v561
      %v726 = vpop.f32.mrb[0].mxu0
      %v727 = vadd.f32 0.0, %v726
      %v728 = vpop.f32.mrb[0].mxu0
      %729 = vmatprep.mubr.f32.mxu0 0.0
      %730 = vmatmul.mubr.f32.gmra.mrb[0].mxu0 %v564
      %v731 = vpop.f32.mrb[0].mxu0
      %v732 = vadd.f32 0.0, %v731
      %v733 = vpop.f32.mrb[0].mxu0
      %734 = vmatprep.mubr.f32.mxu0 0.0
      %735 = vmatmul.mubr.f32.gmra.mrb[0].mxu0 %v567
      %v736 = vpop.f32.mrb[0].mxu0
      %v737 = vadd.f32 0.0, %v736
      %v738 = vpop.f32.mrb[0].mxu0
      %739 = vmatprep.mubr.f32.mxu0 0.0
      %740 = vmatmul.mubr.f32.gmra.mrb[0].mxu0 %v570
      %v741 = vpop.f32.mrb[0].mxu0
      %v742 = vadd.f32 0.0, %v741
      %v743 = vpop.f32.mrb[0].mxu0
      %744 = vmatprep.mubr.f32.mxu0 0.0
      %745 = vmatmul.mubr.f32.gmra.mrb[0].mxu0 %v573
      %v746 = vpop.f32.mrb[0].mxu0
      %v747 = vadd.f32 0.0, %v746
      %v748 = vpop.f32.mrb[0].mxu0
      %749 = vmatprep.mubr.f32.mxu0 0.0
      %750 = vmatmul.mubr.f32.gmra.mrb[0].mxu0 %v576
      %v751 = vpop.f32.mrb[0].mxu0
      %v752 = vadd.f32 0.0, %v751
      %v753 = vpop.f32.mrb[0].mxu0
      %754 = vmatprep.mubr.f32.mxu0 0.0
      %755 = vmatmul.mubr.f32.gmra.mrb[0].mxu0 %v579
      %v756 = vpop.f32.mrb[0].mxu0
      %v757 = vadd.f32 0.0, %v756
      %v758 = vpop.f32.mrb[0].mxu0
      %759 = vmatprep.mubr.f32.mxu0 0.0
      %760 = vmatmul.mubr.f32.gmra.mrb[0].mxu0 %v582
      %v761 = vpop.f32.mrb[0].mxu0
      %v762 = vadd.f32 0.0, %v761
      %v763 = vpop.f32.mrb[0].mxu0
      %764 = vmatprep.mubr.f32.mxu0 0.0
      %765 = vmatmul.mubr.f32.gmra.mrb[0].mxu0 %v585
      %v766 = vpop.f32.mrb[0].mxu0
      %v767 = vadd.f32 0.0, %v766
      %v768 = vpop.f32.mrb[0].mxu0
      %769 = vmatprep.mubr.f32.mxu0 0.0
      %770 = vmatmul.mubr.f32.gmra.mrb[0].mxu0 %v588
      %v771 = vpop.f32.mrb[0].mxu0
      %v772 = vadd.f32 0.0, %v771
      %v773 = vpop.f32.mrb[0].mxu0
      %774 = vmatprep.mubr.f32.mxu0 0.0
      %775 = vmatmul.mubr.f32.gmra.mrb[0].mxu0 %v591
      %v776 = vpop.f32.mrb[0].mxu0
      %v777 = vadd.f32 0.0, %v776
      %v778 = vpop.f32.mrb[0].mxu0
      %779 = vmatprep.mubr.f32.mxu0 0.0
      %780 = vmatmul.mubr.f32.gmra.mrb[0].mxu0 %v594
      %v781 = vpop.f32.mrb[0].mxu0
      %v782 = vadd.f32 0.0, %v781
      %v783 = vpop.f32.mrb[0].mxu0
      %784 = vmatprep.mubr.f32.mxu0 0.0
      %785 = vmatmul.mubr.f32.gmra.mrb[0].mxu0 %v597
      %v786 = vpop.f32.mrb[0].mxu0
      %v787 = vadd.f32 0.0, %v786
      %v788 = vpop.f32.mrb[0].mxu0
      %789 = vmatprep.mubr.f32.mxu0 0.0
      %790 = vmatmul.mubr.f32.gmra.mrb[0].mxu0 %v600
      %v791 = vpop.f32.mrb[0].mxu0
      %v792 = vadd.f32 0.0, %v791
      %v793 = vpop.f32.mrb[0].mxu0
      %794 = vmatprep.mubr.f32.mxu0 0.0
      %795 = vmatmul.mubr.f32.gmra.mrb[0].mxu0 %v603
      %v796 = vpop.f32.mrb[0].mxu0
      %v797 = vadd.f32 0.0, %v796
      %v798 = vpop.f32.mrb[0].mxu0
      %799 = vmatprep.mubr.f32.mxu0 0.0
      %800 = vmatmul.mubr.f32.gmra.mrb[0].mxu0 %v606
      %v801 = vpop.f32.mrb[0].mxu0
      %v802 = vadd.f32 0.0, %v801
      %v803 = vpop.f32.mrb[0].mxu0
      %804 = vmatprep.mubr.f32.mxu0 0.0
      %805 = vmatmul.mubr.f32.gmra.mrb[0].mxu0 %v609
      %v806 = vpop.f32.mrb[0].mxu0
      %v807 = vadd.f32 0.0, %v806
      %v808 = vpop.f32.mrb[0].mxu0
      %809 = vmatprep.mubr.f32.mxu0 0.0
      %810 = vmatmul.mubr.f32.gmra.mrb[0].mxu0 %v612
      %v811 = vpop.f32.mrb[0].mxu0
      %v812 = vadd.f32 0.0, %v811
      %v813 = vpop.f32.mrb[0].mxu0
      %814 = vmatprep.mubr.f32.mxu0 0.0
      %815 = vmatmul.mubr.f32.gmra.mrb[0].mxu0 %v615
      %v816 = vpop.f32.mrb[0].mxu0
      %v817 = vadd.f32 0.0, %v816
      %v818 = vpop.f32.mrb[0].mxu0
      %819 = vmatprep.mubr.f32.mxu0 0.0
      %820 = vmatmul.mubr.f32.gmra.mrb[0].mxu0 %v618
      %v821 = vpop.f32.mrb[0].mxu0
      %v822 = vadd.f32 0.0, %v821
      %v823 = vpop.f32.mrb[0].mxu0
      %824 = vmatprep.mubr.f32.mxu0 0.0
      %825 = vmatmul.mubr.f32.gmra.mrb[0].mxu0 %v621
      %v826 = vpop.f32.mrb[0].mxu0
      %v827 = vadd.f32 0.0, %v826
      %v828 = vpop.f32.mrb[0].mxu0
      %829 = vmatprep.mubr.f32.mxu0 0.0
      %830 = vmatmul.mubr.f32.gmra.mrb[0].mxu0 %v624
      %v831 = vpop.f32.mrb[0].mxu0
      %v832 = vadd.f32 0.0, %v831
      %v833 = vpop.f32.mrb[0].mxu0
      %834 = vmatprep.mubr.f32.mxu0 0.0
      %835 = vmatmul.mubr.f32.gmra.mrb[0].mxu0 %v627
      %v836 = vpop.f32.mrb[0].mxu0
      %v837 = vadd.f32 0.0, %v836
      %v838 = vpop.f32.mrb[0].mxu0
      %839 = vmatprep.mubr.f32.mxu0 0.0
      %840 = vmatmul.mubr.f32.gmra.mrb[0].mxu0 %v630
      %v841 = vpop.f32.mrb[0].mxu0
      %v842 = vadd.f32 0.0, %v841
      %v843 = vpop.f32.mrb[0].mxu0
      %844 = vmatprep.mubr.f32.mxu0 0.0
      %845 = vmatmul.mubr.f32.gmra.mrb[0].mxu0 %v633
      %v846 = vpop.f32.mrb[0].mxu0
      %v847 = vadd.f32 0.0, %v846
      %v848 = vpop.f32.mrb[0].mxu0
      %849 = vmatprep.mubr.f32.mxu0 0.0
      %850 = vmatmul.mubr.f32.gmra.mrb[0].mxu0 %v636
      %v851 = vpop.f32.mrb[0].mxu0
      %v852 = vadd.f32 0.0, %v851
      %v853 = vpop.f32.mrb[0].mxu0
      %854 = vmatprep.mubr.f32.mxu0 0.0
      %855 = vmatmul.mubr.f32.gmra.mrb[0].mxu0 %v639
      %v856 = vpop.f32.mrb[0].mxu0
      %v857 = vadd.f32 0.0, %v856
      %v858 = vpop.f32.mrb[0].mxu0
      %859 = vmatprep.mubr.f32.mxu0 0.0
      %860 = vmatmul.mubr.f32.gmra.mrb[0].mxu0 %v642
      %v861 = vpop.f32.mrb[0].mxu0
      %v862 = vadd.f32 0.0, %v861
      %v863 = vpop.f32.mrb[0].mxu0
      %864 = vmatprep.mubr.f32.mxu0 0.0
      %865 = vmatmul.mubr.f32.gmra.mrb[0].mxu0 %v645
      %v866 = vpop.f32.mrb[0].mxu0
      %v867 = vadd.f32 0.0, %v866
      %v868 = vpop.f32.mrb[0].mxu0
      %869 = vmatprep.mubr.f32.mxu0 0.0
      %870 = vmatmul.mubr.f32.gmra.mrb[0].mxu0 %v648
      %v871 = vpop.f32.mrb[0].mxu0
      %v872 = vadd.f32 0.0, %v871
      %v873 = vpop.f32.mrb[0].mxu0
      %874 = vdwg.mxu0
      %v875 = vmax.f32 %v717, %v737
      %v876 = vmax.f32 %v722, %v742
      %v877 = vmax.f32 %v727, %v747
      %v878 = vmax.f32 %v732, %v752
      %v879 = vmax.f32 %v875, %v757
      %v880 = vmax.f32 %v876, %v762
      %v881 = vmax.f32 %v877, %v767
      %v882 = vmax.f32 %v878, %v772
      %v883 = vmax.f32 %v879, %v777
      %v884 = vmax.f32 %v880, %v782
      %v885 = vmax.f32 %v881, %v787
      %v886 = vmax.f32 %v882, %v792
      %v887 = vmax.f32 %v883, %v797
      %v888 = vmax.f32 %v884, %v802
      %v889 = vmax.f32 %v885, %v807
      %v890 = vmax.f32 %v886, %v812
      %v891 = vmax.f32 %v887, %v817
      %v892 = vmax.f32 %v888, %v822
      %v893 = vmax.f32 %v889, %v827
      %v894 = vmax.f32 %v890, %v832
      %v895 = vmax.f32 %v891, %v837
      %v896 = vmax.f32 %v892, %v842
      %v897 = vmax.f32 %v893, %v847
      %v898 = vmax.f32 %v894, %v852
      %v899 = vmax.f32 %v895, %v857
      %v900 = vmax.f32 %v896, %v862
      %v901 = vmax.f32 %v897, %v867
      %v902 = vmax.f32 %v898, %v872
      %v903 = vmax.f32 %v899, %v900
      %v904 = vmax.f32 %v901, %v902
      %v905 = vmax.f32 %v903, %v904
      %v906 = vrot.slane %v905, 4
      %v907 = vmax.f32 %v905, %v906
      %v908 = vrot.slane %v907, 2
      %v909 = vmax.f32 %v907, %v908
      %v910 = vrot.slane %v909, 1
      %v911 = vmax.f32 %v909, %v910
      %v912 = vsub.f32 %v717, %v911
      %v913 = vsub.f32 %v722, %v911
      %v914 = vsub.f32 %v727, %v911
      %v915 = vsub.f32 %v732, %v911
      %v916 = vsub.f32 %v737, %v911
      %v917 = vsub.f32 %v742, %v911
      %v918 = vsub.f32 %v747, %v911
      %v919 = vsub.f32 %v752, %v911
      %v920 = vsub.f32 %v757, %v911
      %v921 = vsub.f32 %v762, %v911
      %v922 = vsub.f32 %v767, %v911
      %v923 = vsub.f32 %v772, %v911
      %v924 = vsub.f32 %v777, %v911
      %v925 = vsub.f32 %v782, %v911
      %v926 = vsub.f32 %v787, %v911
      %v927 = vsub.f32 %v792, %v911
      %v928 = vsub.f32 %v797, %v911
      %v929 = vsub.f32 %v802, %v911
      %v930 = vsub.f32 %v807, %v911
      %v931 = vsub.f32 %v812, %v911
      %v932 = vsub.f32 %v817, %v911
      %v933 = vsub.f32 %v822, %v911
      %v934 = vsub.f32 %v827, %v911
      %v935 = vsub.f32 %v832, %v911
      %v936 = vsub.f32 %v837, %v911
      %v937 = vsub.f32 %v842, %v911
      %v938 = vsub.f32 %v847, %v911
      %v939 = vsub.f32 %v852, %v911
      %v940 = vsub.f32 %v857, %v911
      %v941 = vsub.f32 %v862, %v911
      %v942 = vsub.f32 %v867, %v911
      %v943 = vsub.f32 %v872, %v911
      %v944 = vmul.f32 %v912, 1.442695
      %v945 = vpow.pop %v944
      %v946 = vmul.f32 %v913, 1.442695
      %v947 = vpow.pop %v946
      %v948 = vmul.f32 %v914, 1.442695
      %v949 = vpow.pop %v948
      %v950 = vmul.f32 %v915, 1.442695
      %v951 = vpow.pop %v950
      %v952 = vmul.f32 %v916, 1.442695
      %v953 = vpow.pop %v952
      %v954 = vmul.f32 %v917, 1.442695
      %v955 = vpow.pop %v954
      %v956 = vmul.f32 %v918, 1.442695
      %v957 = vpow.pop %v956
      %v958 = vmul.f32 %v919, 1.442695
      %v959 = vpow.pop %v958
      %v960 = vmul.f32 %v920, 1.442695
      %v961 = vpow.pop %v960
      %v962 = vmul.f32 %v921, 1.442695
      %v963 = vpow.pop %v962
      %v964 = vmul.f32 %v922, 1.442695
      %v965 = vpow.pop %v964
      %v966 = vmul.f32 %v923, 1.442695
      %v967 = vpow.pop %v966
      %v968 = vmul.f32 %v924, 1.442695
      %v969 = vpow.pop %v968
      %v970 = vmul.f32 %v925, 1.442695
      %v971 = vpow.pop %v970
      %v972 = vmul.f32 %v926, 1.442695
      %v973 = vpow.pop %v972
      %v974 = vmul.f32 %v927, 1.442695
      %v975 = vpow.pop %v974
      %v976 = vmul.f32 %v928, 1.442695
      %v977 = vpow.pop %v976
      %v978 = vmul.f32 %v929, 1.442695
      %v979 = vpow.pop %v978
      %v980 = vmul.f32 %v930, 1.442695
      %v981 = vpow.pop %v980
      %v982 = vmul.f32 %v931, 1.442695
      %v983 = vpow.pop %v982
      %v984 = vmul.f32 %v932, 1.442695
      %v985 = vpow.pop %v984
      %v986 = vmul.f32 %v933, 1.442695
      %v987 = vpow.pop %v986
      %v988 = vmul.f32 %v934, 1.442695
      %v989 = vpow.pop %v988
      %v990 = vmul.f32 %v935, 1.442695
      %v991 = vpow.pop %v990
      %v992 = vmul.f32 %v936, 1.442695
      %v993 = vpow.pop %v992
      %v994 = vmul.f32 %v937, 1.442695
      %v995 = vpow.pop %v994
      %v996 = vmul.f32 %v938, 1.442695
      %v997 = vpow.pop %v996
      %v998 = vmul.f32 %v939, 1.442695
      %v999 = vpow.pop %v998
      %v1000 = vmul.f32 %v940, 1.442695
      %v1001 = vpow.pop %v1000
      %v1002 = vmul.f32 %v941, 1.442695
      %v1003 = vpow.pop %v1002
      %v1004 = vmul.f32 %v942, 1.442695
      %v1005 = vpow.pop %v1004
      %v1006 = vmul.f32 %v943, 1.442695
      %v1007 = vpow.pop %v1006
      %v1008 = vadd.f32 %v945, %v947
      %v1009 = vadd.f32 %v1008, %v949
      %v1010 = vadd.f32 %v1009, %v951
      %v1011 = vadd.f32 %v1010, %v953
      %v1012 = vadd.f32 %v1011, %v955
      %v1013 = vadd.f32 %v1012, %v957
      %v1014 = vadd.f32 %v1013, %v959
      %v1015 = vadd.f32 %v1014, %v961
      %v1016 = vadd.f32 %v1015, %v963
      %v1017 = vadd.f32 %v1016, %v965
      %v1018 = vadd.f32 %v1017, %v967
      %v1019 = vadd.f32 %v1018, %v969
      %v1020 = vadd.f32 %v1019, %v971
      %v1021 = vadd.f32 %v1020, %v973
      %v1022 = vadd.f32 %v1021, %v975
      %v1023 = vadd.f32 %v1022, %v977
      %v1024 = vadd.f32 %v1023, %v979
      %v1025 = vadd.f32 %v1024, %v981
      %v1026 = vadd.f32 %v1025, %v983
      %v1027 = vadd.f32 %v1026, %v985
      %v1028 = vadd.f32 %v1027, %v987
      %v1029 = vadd.f32 %v1028, %v989
      %v1030 = vadd.f32 %v1029, %v991
      %v1031 = vadd.f32 %v1030, %v993
      %v1032 = vadd.f32 %v1031, %v995
      %v1033 = vadd.f32 %v1032, %v997
      %v1034 = vadd.f32 %v1033, %v999
      %v1035 = vadd.f32 %v1034, %v1001
      %v1036 = vadd.f32 %v1035, %v1003
      %v1037 = vadd.f32 %v1036, %v1005
      %v1038 = vadd.f32 %v1037, %v1007
      %v1039 = vrot.slane %v1038, 4
      %v1040 = vadd.f32 %v1038, %v1039
      %v1041 = vrot.slane %v1040, 2
      %v1042 = vadd.f32 %v1040, %v1041
      %v1043 = vrot.slane %v1042, 1
      %v1044 = vadd.f32 %v1042, %v1043
      %1045 = vmatprep.subr.mxu0 0.0
      %1046 = vmatpush1.msra.mxu0 %v945
      %1047 = vmatprep.subr.mxu0 0.0
      %1048 = vmatpush1.msra.mxu0 %v947
      %1049 = vmatprep.subr.mxu0 0.0
      %1050 = vmatpush1.msra.mxu0 %v949
      %1051 = vmatprep.subr.mxu0 0.0
      %1052 = vmatpush1.msra.mxu0 %v951
      %1053 = vmatprep.subr.mxu0 0.0
      %1054 = vmatpush1.msra.mxu0 %v953
      %1055 = vmatprep.subr.mxu0 0.0
      %1056 = vmatpush1.msra.mxu0 %v955
      %1057 = vmatprep.subr.mxu0 0.0
      %1058 = vmatpush1.msra.mxu0 %v957
      %1059 = vmatprep.subr.mxu0 0.0
      %1060 = vmatpush1.msra.mxu0 %v959
      %1061 = vmatprep.subr.mxu0 0.0
      %1062 = vmatpush1.msra.mxu0 %v961
      %1063 = vmatprep.subr.mxu0 0.0
      %1064 = vmatpush1.msra.mxu0 %v963
      %1065 = vmatprep.subr.mxu0 0.0
      %1066 = vmatpush1.msra.mxu0 %v965
      %1067 = vmatprep.subr.mxu0 0.0
      %1068 = vmatpush1.msra.mxu0 %v967
      %1069 = vmatprep.subr.mxu0 0.0
      %1070 = vmatpush1.msra.mxu0 %v969
      %1071 = vmatprep.subr.mxu0 0.0
      %1072 = vmatpush1.msra.mxu0 %v971
      %1073 = vmatprep.subr.mxu0 0.0
      %1074 = vmatpush1.msra.mxu0 %v973
      %1075 = vmatprep.subr.mxu0 0.0
      %1076 = vmatpush1.msra.mxu0 %v975
      %1077 = vmatprep.subr.mxu0 0.0
      %1078 = vmatpush1.msra.mxu0 %v977
      %1079 = vmatprep.subr.mxu0 0.0
      %1080 = vmatpush1.msra.mxu0 %v979
      %1081 = vmatprep.subr.mxu0 0.0
      %1082 = vmatpush1.msra.mxu0 %v981
      %1083 = vmatprep.subr.mxu0 0.0
      %1084 = vmatpush1.msra.mxu0 %v983
      %1085 = vmatprep.subr.mxu0 0.0
      %1086 = vmatpush1.msra.mxu0 %v985
      %1087 = vmatprep.subr.mxu0 0.0
      %1088 = vmatpush1.msra.mxu0 %v987
      %1089 = vmatprep.subr.mxu0 0.0
      %1090 = vmatpush1.msra.mxu0 %v989
      %1091 = vmatprep.subr.mxu0 0.0
      %1092 = vmatpush1.msra.mxu0 %v991
      %1093 = vmatprep.subr.mxu0 0.0
      %1094 = vmatpush1.msra.mxu0 %v993
      %1095 = vmatprep.subr.mxu0 0.0
      %1096 = vmatpush1.msra.mxu0 %v995
      %1097 = vmatprep.subr.mxu0 0.0
      %1098 = vmatpush1.msra.mxu0 %v997
      %1099 = vmatprep.subr.mxu0 0.0
      %1100 = vmatpush1.msra.mxu0 %v999
      %1101 = vmatprep.subr.mxu0 0.0
      %1102 = vmatpush1.msra.mxu0 %v1001
      %1103 = vmatprep.subr.mxu0 0.0
      %1104 = vmatpush1.msra.mxu0 %v1003
      %1105 = vmatprep.subr.mxu0 0.0
      %1106 = vmatpush1.msra.mxu0 %v1005
      %1107 = vmatprep.subr.mxu0 0.0
      %1108 = vmatpush1.msra.mxu0 %v1007
      %1109 = vmatprep.mubr.f32.mxu0 %v488
      %1110 = vmatmul.mubr.f32.gmra.mrb[0].mxu0 %v487
      %v1111 = vpop.f32.mrb[0].mxu0
      %v1112 = vadd.f32 0.0, %v1111
      %v1113 = vpop.f32.mrb[0].mxu0
      %1114 = vdwg.mxu0
      %v1115 = vrcp.pop %v1044
      %v1116 = vmul.f32 %v1112, %v1115
      %v1117 = vld [vmem:[%s4] sm:$0xf]
      %v1118 = vld [vmem:[%s468] sm:$0x1]
      %v1120 = vlaneseq
      %v1121 = vshrl.u32 %v1120, 7
      %v1122 = vsub.s32 0, %v1121
      %v1123 = vrot.slane %v1118, %v1122
      %v1125 = vmul.f32 %v1117, %v1123
      %v1126 = vmul.f32 %v1125, %v1125
      %vm1127 = vcmask 60416
      %v1128 = vsel %vm1127, %v1126, 0.0
      %1129 = vadd.xlane.f32.xlu0 %v1128
      %v1130 = vpop.xlane.xlu0 %1129
      %v1131 = vadd.f32 %v1130, 1e-08
      %v1132 = vrsqrt.pop %v1131
      %v1133 = vmul.f32 %v1125, %v1132
      %v1134 = vld [vmem:[%s475] sm:$0x1]
      %v1136 = vlaneseq
      %v1137 = vshrl.u32 %v1136, 7
      %v1138 = vsub.s32 0, %v1137
      %v1139 = vrot.slane %v1134, %v1138
      %v1142 = vsel %vm553, %v1133, 0
      %1144 = vmatprep.subr.mxu0 0.0
      %1145 = vmatpush1.msra.mxu0 %v1116
      %1146 = vmatprep.subr.mxu0 0.0
      %1147 = vmatpush1.msra.mxu0 0.0
      %1148 = vmatprep.subr.mxu0 0.0
      %1149 = vmatpush1.msra.mxu0 0.0
      %1150 = vmatprep.subr.mxu0 0.0
      %1151 = vmatpush1.msra.mxu0 0.0
      %1152 = vmatprep.subr.mxu0 0.0
      %1153 = vmatpush1.msra.mxu0 0.0
      %1154 = vmatprep.subr.mxu0 0.0
      %1155 = vmatpush1.msra.mxu0 0.0
      %1156 = vmatprep.subr.mxu0 0.0
      %1157 = vmatpush1.msra.mxu0 0.0
      %1158 = vmatprep.subr.mxu0 0.0
      %1159 = vmatpush1.msra.mxu0 0.0
      %1160 = vmatprep.subr.mxu0 0.0
      %1161 = vmatpush1.msra.mxu0 0.0
      %1162 = vmatprep.subr.mxu0 0.0
      %1163 = vmatpush1.msra.mxu0 0.0
      %1164 = vmatprep.subr.mxu0 0.0
      %1165 = vmatpush1.msra.mxu0 0.0
      %1166 = vmatprep.subr.mxu0 0.0
      %1167 = vmatpush1.msra.mxu0 0.0
      %1168 = vmatprep.subr.mxu0 0.0
      %1169 = vmatpush1.msra.mxu0 0.0
      %1170 = vmatprep.subr.mxu0 0.0
      %1171 = vmatpush1.msra.mxu0 0.0
      %1172 = vmatprep.subr.mxu0 0.0
      %1173 = vmatpush1.msra.mxu0 0.0
      %1174 = vmatprep.subr.mxu0 0.0
      %1175 = vmatpush1.msra.mxu0 0.0
      %1176 = vmatprep.subr.mxu0 0.0
      %1177 = vmatpush1.msra.mxu0 0.0
      %1178 = vmatprep.subr.mxu0 0.0
      %1179 = vmatpush1.msra.mxu0 0.0
      %1180 = vmatprep.subr.mxu0 0.0
      %1181 = vmatpush1.msra.mxu0 0.0
      %1182 = vmatprep.subr.mxu0 0.0
      %1183 = vmatpush1.msra.mxu0 0.0
      %1184 = vmatprep.subr.mxu0 0.0
      %1185 = vmatpush1.msra.mxu0 0.0
      %1186 = vmatprep.subr.mxu0 0.0
      %1187 = vmatpush1.msra.mxu0 0.0
      %1188 = vmatprep.subr.mxu0 0.0
      %1189 = vmatpush1.msra.mxu0 0.0
      %1190 = vmatprep.subr.mxu0 0.0
      %1191 = vmatpush1.msra.mxu0 0.0
      %1192 = vmatprep.subr.mxu0 0.0
      %1193 = vmatpush1.msra.mxu0 0.0
      %1194 = vmatprep.subr.mxu0 0.0
      %1195 = vmatpush1.msra.mxu0 0.0
      %1196 = vmatprep.subr.mxu0 0.0
      %1197 = vmatpush1.msra.mxu0 0.0
      %1198 = vmatprep.subr.mxu0 0.0
      %1199 = vmatpush1.msra.mxu0 0.0
      %1200 = vmatprep.subr.mxu0 0.0
      %1201 = vmatpush1.msra.mxu0 0.0
      %1202 = vmatprep.subr.mxu0 0.0
      %1203 = vmatpush1.msra.mxu0 0.0
      %1204 = vmatprep.subr.mxu0 0.0
      %1205 = vmatpush1.msra.mxu0 0.0
      %1206 = vmatprep.subr.mxu0 0.0
      %1207 = vmatpush1.msra.mxu0 0.0
      %1208 = vmatprep.mubr.f32.mxu0 0.0
      %1209 = vmatmul.mubr.f32.gmra.mrb[0].mxu0 %v1142
      %v1210 = vpop.f32.mrb[0].mxu0
      %v1211 = vadd.f32 %v1139, %v1210
      %v1212 = vpop.f32.mrb[0].mxu0
      %1213 = vdwg.mxu0
      %v1214 = vld [vmem:[%s7] sm:$0xf]
      %1216 = vset.pattern.permute.xlu0 0
      %1217 = vperm.xlu0 %1216, %v1214
      %v1218 = vpop.permute.xlu0 %1217
      %v1220 = vadd.f32 %v1211, %v1218
      %s1221 = sld [smem:[#allocation2]]
      %v1222 = vstv %s1221
      %v1223 = vmul.f32 %v1222, %v1220
      %v1224 = vld [vmem:[%s465] sm:$0xf]
      %v1225 = vadd.f32 %v1223, %v1224
      %1226 = vst [vmem:[%s483] sm:$0xf] %v1225
      %p1227 = scmp.lt.s32.totalorder %s25, 1
      %s1228 = scalar_select %p1227, %s25, 1
      %p1229 = scmp.lt.s32.totalorder %s26, 1
      %s1230 = scalar_select %p1229, %s26, 1
      %s1231 = smul.addr %s1228, 2
      %s1232 = sadd.s32 %s1230, %s1231
      %s1233 = smul.addr %s1232, 4
      %s1234 = scalar_lea.vmem %s9, %s1233
      // Predicated region
      $region57: #{_lambda_.3} parent=55 // pred_check
        %p1235 = pneg %p278
      $region58: #{_lambda_.3} parent=55 // pred_check_branch
        %1237 = sbr.rel (%p1235) target = $region60
      $region59: #{_lambda_.3} parent=55 // pred_region
        _
      $region60: #{_lambda_.3} parent=55 // pred_fallthru
        _
    $region56: #{_lambda_.3} parent=5 // pred_fallthru
      _
    %p1238 = scmp.le.s32.totalorder 2, %s16
    // Predicated region
    $region61: #{_lambda_.3} parent=5 // pred_check
      %p1239 = pneg %p1238
    $region62: #{_lambda_.3} parent=5 // pred_check_branch
      %1241 = sbr.rel (%p1239) target = $region64
    $region63: #{_lambda_.3} parent=5 // pred_region
      %s1242 = ssub.s32 %s16, 2
      // Predicated region
      $region65: #{_lambda_.3} parent=63 // pred_check
        %p1243 = pneg %p284
      $region66: #{_lambda_.3} parent=63 // pred_check_branch
        %1245 = sbr.rel (%p1243) target = $region68
      $region67: #{_lambda_.3} parent=63 // pred_region
        %p1246 = scmp.lt.s32.totalorder %s27, 1
        %s1247 = scalar_select %p1246, %s27, 1
        %p1248 = scmp.lt.s32.totalorder %s28, 1
        %s1249 = scalar_select %p1248, %s28, 1
        %s1250 = smul.addr %s1247, 2
        %s1251 = sadd.s32 %s1249, %s1250
        %s1252 = smul.addr %s1251, 4
        %s1253 = scalar_lea.vmem %s9, %s1252
      $region68: #{_lambda_.3} parent=63 // pred_fallthru
        _
    $region64: #{_lambda_.3} parent=5 // pred_fallthru
      _
  $region6: #{_lambda_.3} parent=0 // loop_footer
    %s20 = sadd.s32 1, %s16
  $region7: #{_lambda_.3} parent=0 // loop_footer_branch
    %15 = sbr.rel target = $region3
  $region8: #{_lambda_.3} parent=0 // loop_exit
    _

</llo_original>
